<compile_context>
chip_gen: v7x
topology: tpu7x:2x2x1
jax: 0.10.0
libtpu: 0.0.40
codegen_flags: <defaults>
</compile_context>

<pallas_src>
import functools

import jax
import jax.numpy as jnp
from jax import lax
from jax.experimental import pallas as pl
from jax.experimental.pallas import tpu as pltpu


# ----------------------------------------------------------------------------
# Kernels
# ----------------------------------------------------------------------------
def _fused_mha_ln_kernel(q_ref, kv_ref, wq_ref, wk_ref, wv_ref, bv_ref,
                         g_ref, beta_ref, o_ref, *, num_heads, causal):
    """One batch element of fused multi-head attention + residual + LayerNorm.

    q_ref : (1, Sq, D)   -- query; also the residual branch of the module
    kv_ref: (1, Sk, D)   -- key/value source
    wq/wk/wv_ref : (D, H*E)   (heads fused along the output/lane dim)
    bv_ref: (1, H*E)   g/beta: (1, D)
    o_ref : (1, Sq, D) == LayerNorm(attn_out + q)
    """
    q = q_ref[0]
    kv = kv_ref[0]

    # Head-fused, lane-dense projections: single (S, D) @ (D, H*E) matmuls.
    qh = jnp.dot(q, wq_ref[...], preferred_element_type=jnp.float32)    # (Sq, HE)
    kh = jnp.dot(kv, wk_ref[...], preferred_element_type=jnp.float32)   # (Sk, HE)
    vh = jnp.dot(kv, wv_ref[...], preferred_element_type=jnp.float32) + bv_ref[...]

    sq, he = qh.shape
    sk = kh.shape[0]
    e = he // num_heads
    scale = e ** (-0.5)

    if causal:
        # Built once per grid step (heads fused); finite fill avoids exp(-inf).
        row = lax.broadcasted_iota(jnp.int32, (sq, sk), 0)
        col = lax.broadcasted_iota(jnp.int32, (sq, sk), 1)
        keep = col <= row

    # Per-head score / softmax / PV.  The contractions here are inherently
    # E-wide; the heavy D-wide work above is already fused and lane-dense.
    head_outs = []
    for h in range(num_heads):
        lo, hi = h * e, (h + 1) * e
        s = jnp.dot(qh[:, lo:hi], kh[:, lo:hi].T,
                    preferred_element_type=jnp.float32) * scale          # (Sq, Sk)
        if causal:
            s = jnp.where(keep, s, -1e30)
        m = jnp.max(s, axis=-1, keepdims=True)
        p = jnp.exp(s - m)
        # EUP approximate reciprocal: divide disappears from the VALU budget.
        p = p * pl.reciprocal(jnp.sum(p, axis=-1, keepdims=True), approx=True)
        head_outs.append(jnp.dot(p, vh[:, lo:hi],
                                 preferred_element_type=jnp.float32))
    attn = jnp.concatenate(head_outs, axis=-1)     # (Sq, H*E) == torch.cat order

    # Fused epilogue: residual add + LayerNorm (mem-bound -> hidden under MXU).
    x = attn + q
    mean = jnp.mean(x, axis=-1, keepdims=True)
    var = jnp.mean(jnp.square(x - mean), axis=-1, keepdims=True)
    y = (x - mean) * lax.rsqrt(var + 1e-5)
    o_ref[0] = (y * g_ref[...] + beta_ref[...]).astype(o_ref.dtype)


def _fused_ffn_ln_kernel(x_ref, w1_ref, b1_ref, w2_ref, b2_ref,
                         g_ref, beta_ref, o_ref):
    """o = LayerNorm(x + relu(x @ w1 + b1) @ w2 + b2).  x/o: (1, S, D)."""
    x = x_ref[0]
    h = jnp.dot(x, w1_ref[...], preferred_element_type=jnp.float32) + b1_ref[...]
    h = jnp.maximum(h, 0.0)
    y = jnp.dot(h, w2_ref[...], preferred_element_type=jnp.float32) + b2_ref[...]
    z = x + y
    mean = jnp.mean(z, axis=-1, keepdims=True)
    var = jnp.mean(jnp.square(z - mean), axis=-1, keepdims=True)
    zn = (z - mean) * lax.rsqrt(var + 1e-5)
    o_ref[0] = (zn * g_ref[...] + beta_ref[...]).astype(o_ref.dtype)


# ----------------------------------------------------------------------------
# Pallas wrappers
# ----------------------------------------------------------------------------
def mha_add_ln_pallas(q, kv, wq, wk, wv, bv, gamma, beta, *, causal):
    """Fused multi-head attention (per-head independent weights, like the
    ModuleList of SelfAttentionBlocks) + residual(q) + LayerNorm.

    Returns LayerNorm(concat_heads(attn(q, kv, kv)) + q)  as [B, Sq, D]."""
    B, Sq, D = q.shape
    Sk = kv.shape[1]
    H, _, E = wq.shape
    HE = H * E  # == D for this module

    # Fuse heads on the host: [H, D, E] -> [D, H*E] (layout plumbing only).
    wq_f = wq.transpose(1, 0, 2).reshape(D, HE)
    wk_f = wk.transpose(1, 0, 2).reshape(D, HE)
    wv_f = wv.transpose(1, 0, 2).reshape(D, HE)
    bv_f = bv.reshape(1, HE)

    kern = functools.partial(_fused_mha_ln_kernel, num_heads=H, causal=causal)
    return pl.pallas_call(
        kern,
        out_shape=jax.ShapeDtypeStruct((B, Sq, HE), jnp.float32),
        grid=(B,),
        in_specs=[
            pl.BlockSpec((1, Sq, D), lambda b: (b, 0, 0)),   # q (and residual)
            pl.BlockSpec((1, Sk, D), lambda b: (b, 0, 0)),   # k/v source
            pl.BlockSpec((D, HE), lambda b: (0, 0)),         # wq (fused heads)
            pl.BlockSpec((D, HE), lambda b: (0, 0)),         # wk
            pl.BlockSpec((D, HE), lambda b: (0, 0)),         # wv
            pl.BlockSpec((1, HE), lambda b: (0, 0)),         # bv
            pl.BlockSpec((1, D), lambda b: (0, 0)),          # ln gamma
            pl.BlockSpec((1, D), lambda b: (0, 0)),          # ln beta
        ],
        out_specs=pl.BlockSpec((1, Sq, HE), lambda b: (b, 0, 0)),
        compiler_params=pltpu.CompilerParams(
            dimension_semantics=("parallel",)),
    )(q, kv, wq_f, wk_f, wv_f, bv_f, gamma, beta)


def ffn_add_ln_pallas(x, w1, b1, w2, b2, gamma, beta):
    """Returns LayerNorm(x + FFN(x)) as [B, S, D]."""
    B, S, D = x.shape
    Dff = w1.shape[1]
    return pl.pallas_call(
        _fused_ffn_ln_kernel,
        out_shape=jax.ShapeDtypeStruct((B, S, D), jnp.float32),
        grid=(B,),
        in_specs=[
            pl.BlockSpec((1, S, D), lambda i: (i, 0, 0)),
            pl.BlockSpec((D, Dff), lambda i: (0, 0)),
            pl.BlockSpec((1, Dff), lambda i: (0, 0)),
            pl.BlockSpec((Dff, D), lambda i: (0, 0)),
            pl.BlockSpec((1, D), lambda i: (0, 0)),
            pl.BlockSpec((1, D), lambda i: (0, 0)),
            pl.BlockSpec((1, D), lambda i: (0, 0)),
        ],
        out_specs=pl.BlockSpec((1, S, D), lambda i: (i, 0, 0)),
        compiler_params=pltpu.CompilerParams(dimension_semantics=("parallel",)),
    )(x, w1, b1, w2, b2, gamma, beta)


def transformer_decoder_block_pallas(input_tensor, encoder_output, params):
    p = params
    # masked (causal) self attention + residual + LN   (one fused kernel)
    x = mha_add_ln_pallas(input_tensor, input_tensor,
                          p["wq_m"], p["wk_m"], p["wv_m"], p["bv_m"],
                          p["ln1_g"], p["ln1_b"], causal=True)
    # cross attention + residual + LN                  (one fused kernel)
    x = mha_add_ln_pallas(x, encoder_output,
                          p["wq_c"], p["wk_c"], p["wv_c"], p["bv_c"],
                          p["ln2_g"], p["ln2_b"], causal=False)
    # FFN + residual + LN                              (one fused kernel)
    x = ffn_add_ln_pallas(x, p["w1"], p["b1"], p["w2"], p["b2"],
                          p["ln3_g"], p["ln3_b"])
    return x


# ----------------------------------------------------------------------------
# Pure-JAX reference (for correctness checking)
# ----------------------------------------------------------------------------
def _ref_mha(q, k, v, wq, wk, wv, bv, causal):
    qh = jnp.einsum("bsd,hde->bhse", q, wq)
    kh = jnp.einsum("bsd,hde->bhse", k, wk)
    vh = jnp.einsum("bsd,hde->bhse", v, wv) + bv[None]
    scale = wq.shape[-1] ** (-0.5)
    scores = jnp.einsum("bhqe,bhke->bhqk", qh, kh) * scale
    if causal:
        sq, sk = scores.shape[-2:]
        mask = jnp.tril(jnp.ones((sq, sk), bool))
        scores = jnp.where(mask, scores, -jnp.inf)
    p = jax.nn.softmax(scores, axis=-1)
    out = jnp.einsum("bhqk,bhke->bhqe", p, vh)
    B, H, Sq, E = out.shape
    return out.transpose(0, 2, 1, 3).reshape(B, Sq, H * E)


def _ref_ln(x, g, b):
    m = x.mean(-1, keepdims=True)
    v = jnp.square(x - m).mean(-1, keepdims=True)
    return (x - m) / jnp.sqrt(v + 1e-5) * g + b


def _ref_block(inp, enc, p):
    x = _ref_mha(inp, inp, inp, p["wq_m"], p["wk_m"], p["wv_m"], p["bv_m"], True)
    x = _ref_ln(x + inp, p["ln1_g"], p["ln1_b"])
    ca = _ref_mha(x, enc, enc, p["wq_c"], p["wk_c"], p["wv_c"], p["bv_c"], False)
    x = _ref_ln(x + ca, p["ln2_g"], p["ln2_b"])
    ffn = jnp.maximum(x @ p["w1"] + p["b1"], 0.0) @ p["w2"] + p["b2"]
    x = _ref_ln(x + ffn, p["ln3_g"], p["ln3_b"])
    return x


# ----------------------------------------------------------------------------
# Main
# ----------------------------------------------------------------------------
if __name__ == "__main__":
    B, S_dec, S_enc = 2, 8, 16
    D, H, DFF = 32, 4, 64
    E = D // H  # head size

    key = jax.random.PRNGKey(0)
    ks = jax.random.split(key, 24)

    def nrm(k, shape, scale=0.1):
        return (scale * jax.random.normal(k, shape)).astype(jnp.float32)

    params = {
        # masked self-attention heads
        "wq_m": nrm(ks[0], (H, D, E)),
        "wk_m": nrm(ks[1], (H, D, E)),
        "wv_m": nrm(ks[2], (H, D, E)),
        "bv_m": nrm(ks[3], (H, 1, E)),
        # cross-attention heads
        "wq_c": nrm(ks[4], (H, D, E)),
        "wk_c": nrm(ks[5], (H, D, E)),
        "wv_c": nrm(ks[6], (H, D, E)),
        "bv_c": nrm(ks[7], (H, 1, E)),
        # layer norms (gamma, beta) as (1, D)
        "ln1_g": 1.0 + nrm(ks[8], (1, D)),
        "ln1_b": nrm(ks[9], (1, D)),
        "ln2_g": 1.0 + nrm(ks[10], (1, D)),
        "ln2_b": nrm(ks[11], (1, D)),
        "ln3_g": 1.0 + nrm(ks[12], (1, D)),
        "ln3_b": nrm(ks[13], (1, D)),
        # FFN
        "w1": nrm(ks[14], (D, DFF)),
        "b1": nrm(ks[15], (1, DFF)),
        "w2": nrm(ks[16], (DFF, D)),
        "b2": nrm(ks[17], (1, D)),
    }

    input_tensor = nrm(ks[18], (B, S_dec, D), scale=1.0)
    encoder_output = nrm(ks[19], (B, S_enc, D), scale=1.0)

    out = transformer_decoder_block_pallas(input_tensor, encoder_output, params)
    out = jax.block_until_ready(out)

    ref = _ref_block(input_tensor, encoder_output, params)
    assert out.shape == (B, S_dec, D)
    # Tolerance relaxed vs. the exact-divide version because the softmax
    # denominator now uses the EUP approximate reciprocal.
    assert jnp.allclose(out, ref, atol=5e-3, rtol=5e-3), (
        f"max abs err {jnp.max(jnp.abs(out - ref))}")

    print("KERNEL_OK")
</pallas_src>

<mosaic_0001>
module attributes {stable_mosaic.version = 11 : i64} {
  func.func @_fused_mha_ln_kernel(%arg0: i32, %arg1: memref<1x8x32xf32, #tpu.memory_space<vmem>>, %arg2: memref<1x8x32xf32, #tpu.memory_space<vmem>>, %arg3: memref<32x32xf32, #tpu.memory_space<vmem>>, %arg4: memref<32x32xf32, #tpu.memory_space<vmem>>, %arg5: memref<32x32xf32, #tpu.memory_space<vmem>>, %arg6: memref<1x32xf32, #tpu.memory_space<vmem>>, %arg7: memref<1x32xf32, #tpu.memory_space<vmem>>, %arg8: memref<1x32xf32, #tpu.memory_space<vmem>>, %arg9: memref<1x8x32xf32, #tpu.memory_space<vmem>>) attributes {dimension_semantics = [#tpu.dimension_semantics<parallel>], iteration_bounds = array<i64: 2>, scalar_prefetch = 0 : i64, scratch_operands = 0 : i64, tpu.core_type = #tpu.core_type<tc>, window_params = [{transform_indices = @transform_0, window_bounds = array<i64: 1, 8, 32>}, {transform_indices = @transform_1, window_bounds = array<i64: 1, 8, 32>}, {pipeline_mode = #tpu.pipeline_mode<synchronous>, transform_indices = @transform_2, window_bounds = array<i64: 32, 32>}, {pipeline_mode = #tpu.pipeline_mode<synchronous>, transform_indices = @transform_3, window_bounds = array<i64: 32, 32>}, {pipeline_mode = #tpu.pipeline_mode<synchronous>, transform_indices = @transform_4, window_bounds = array<i64: 32, 32>}, {pipeline_mode = #tpu.pipeline_mode<synchronous>, transform_indices = @transform_5, window_bounds = array<i64: 1, 32>}, {pipeline_mode = #tpu.pipeline_mode<synchronous>, transform_indices = @transform_6, window_bounds = array<i64: 1, 32>}, {pipeline_mode = #tpu.pipeline_mode<synchronous>, transform_indices = @transform_7, window_bounds = array<i64: 1, 32>}, {transform_indices = @transform_8, window_bounds = array<i64: 1, 8, 32>}]} {
    %c0 = arith.constant 0 : index
    %c0_0 = arith.constant 0 : index
    %c0_1 = arith.constant 0 : index
    %0 = vector.load %arg1[%c0, %c0_0, %c0_1] : memref<1x8x32xf32, #tpu.memory_space<vmem>>, vector<1x8x32xf32>
    %1 = vector.shape_cast %0 : vector<1x8x32xf32> to vector<8x32xf32>
    %c0_2 = arith.constant 0 : index
    %c0_3 = arith.constant 0 : index
    %c0_4 = arith.constant 0 : index
    %2 = vector.load %arg2[%c0_2, %c0_3, %c0_4] : memref<1x8x32xf32, #tpu.memory_space<vmem>>, vector<1x8x32xf32>
    %3 = vector.shape_cast %2 : vector<1x8x32xf32> to vector<8x32xf32>
    %c0_5 = arith.constant 0 : index
    %c0_6 = arith.constant 0 : index
    %4 = vector.load %arg3[%c0_5, %c0_6] : memref<32x32xf32, #tpu.memory_space<vmem>>, vector<32x32xf32>
    %cst = arith.constant dense<0.000000e+00> : vector<8x32xf32>
    %5 = tpu.matmul %1, %4, %cst {dimension_numbers = #tpu.dot_dimension_numbers<[1], [0], [0], [1], [0, 0, 1, 1], [], []>} : vector<8x32xf32>, vector<32x32xf32>, vector<8x32xf32> -> vector<8x32xf32>
    %c0_7 = arith.constant 0 : index
    %c0_8 = arith.constant 0 : index
    %6 = vector.load %arg4[%c0_7, %c0_8] : memref<32x32xf32, #tpu.memory_space<vmem>>, vector<32x32xf32>
    %cst_9 = arith.constant dense<0.000000e+00> : vector<8x32xf32>
    %7 = tpu.matmul %3, %6, %cst_9 {dimension_numbers = #tpu.dot_dimension_numbers<[1], [0], [0], [1], [0, 0, 1, 1], [], []>} : vector<8x32xf32>, vector<32x32xf32>, vector<8x32xf32> -> vector<8x32xf32>
    %c0_10 = arith.constant 0 : index
    %c0_11 = arith.constant 0 : index
    %8 = vector.load %arg5[%c0_10, %c0_11] : memref<32x32xf32, #tpu.memory_space<vmem>>, vector<32x32xf32>
    %cst_12 = arith.constant dense<0.000000e+00> : vector<8x32xf32>
    %9 = tpu.matmul %3, %8, %cst_12 {dimension_numbers = #tpu.dot_dimension_numbers<[1], [0], [0], [1], [0, 0, 1, 1], [], []>} : vector<8x32xf32>, vector<32x32xf32>, vector<8x32xf32> -> vector<8x32xf32>
    %c0_13 = arith.constant 0 : index
    %c0_14 = arith.constant 0 : index
    %10 = vector.load %arg6[%c0_13, %c0_14] : memref<1x32xf32, #tpu.memory_space<vmem>>, vector<1x32xf32>
    %11 = vector.broadcast %10 : vector<1x32xf32> to vector<8x32xf32>
    %12 = arith.addf %9, %11 : vector<8x32xf32>
    %13 = tpu.iota {dimensions = array<i32: 0>} : vector<8x8xi32>
    %14 = tpu.iota {dimensions = array<i32: 1>} : vector<8x8xi32>
    %15 = arith.cmpi sle, %14, %13 : vector<8x8xi32>
    %16 = vector.extract_strided_slice %5 {offsets = [0, 0], sizes = [8, 8], strides = [1, 1]} : vector<8x32xf32> to vector<8x8xf32>
    %17 = vector.extract_strided_slice %7 {offsets = [0, 0], sizes = [8, 8], strides = [1, 1]} : vector<8x32xf32> to vector<8x8xf32>
    %18 = tpu.transpose %17, [1, 0] : vector<8x8xf32> -> vector<8x8xf32>
    %cst_15 = arith.constant dense<0.000000e+00> : vector<8x8xf32>
    %19 = tpu.matmul %16, %18, %cst_15 {dimension_numbers = #tpu.dot_dimension_numbers<[1], [0], [0], [1], [0, 0, 1, 1], [], []>} : vector<8x8xf32>, vector<8x8xf32>, vector<8x8xf32> -> vector<8x8xf32>
    %cst_16 = arith.constant 0.353553385 : f32
    %20 = vector.broadcast %cst_16 : f32 to vector<8x8xf32>
    %21 = arith.mulf %19, %20 : vector<8x8xf32>
    %cst_17 = arith.constant -1.000000e+30 : f32
    %22 = vector.broadcast %cst_17 : f32 to vector<8x8xf32>
    %23 = arith.select %15, %21, %22 : vector<8x8xi1>, vector<8x8xf32>
    %cst_18 = arith.constant dense<0xFF800000> : vector<8xf32>
    %24 = vector.multi_reduction <maximumf>, %23, %cst_18 [1] : vector<8x8xf32> to vector<8xf32>
    %25 = vector.shape_cast %24 : vector<8xf32> to vector<8x1xf32>
    %26 = vector.broadcast %25 : vector<8x1xf32> to vector<8x8xf32>
    %27 = arith.subf %23, %26 : vector<8x8xf32>
    %28 = math.exp %27 : vector<8x8xf32>
    %cst_19 = arith.constant dense<0.000000e+00> : vector<8xf32>
    %29 = vector.multi_reduction <add>, %28, %cst_19 [1] : vector<8x8xf32> to vector<8xf32>
    %30 = vector.shape_cast %29 : vector<8xf32> to vector<8x1xf32>
    %31 = tpu.reciprocal %30 {approx = true} : vector<8x1xf32> -> vector<8x1xf32>
    %32 = vector.broadcast %31 : vector<8x1xf32> to vector<8x8xf32>
    %33 = arith.mulf %28, %32 : vector<8x8xf32>
    %34 = vector.extract_strided_slice %12 {offsets = [0, 0], sizes = [8, 8], strides = [1, 1]} : vector<8x32xf32> to vector<8x8xf32>
    %cst_20 = arith.constant dense<0.000000e+00> : vector<8x8xf32>
    %35 = tpu.matmul %33, %34, %cst_20 {dimension_numbers = #tpu.dot_dimension_numbers<[1], [0], [0], [1], [0, 0, 1, 1], [], []>} : vector<8x8xf32>, vector<8x8xf32>, vector<8x8xf32> -> vector<8x8xf32>
    %36 = vector.extract_strided_slice %5 {offsets = [0, 8], sizes = [8, 8], strides = [1, 1]} : vector<8x32xf32> to vector<8x8xf32>
    %37 = vector.extract_strided_slice %7 {offsets = [0, 8], sizes = [8, 8], strides = [1, 1]} : vector<8x32xf32> to vector<8x8xf32>
    %38 = tpu.transpose %37, [1, 0] : vector<8x8xf32> -> vector<8x8xf32>
    %cst_21 = arith.constant dense<0.000000e+00> : vector<8x8xf32>
    %39 = tpu.matmul %36, %38, %cst_21 {dimension_numbers = #tpu.dot_dimension_numbers<[1], [0], [0], [1], [0, 0, 1, 1], [], []>} : vector<8x8xf32>, vector<8x8xf32>, vector<8x8xf32> -> vector<8x8xf32>
    %cst_22 = arith.constant 0.353553385 : f32
    %40 = vector.broadcast %cst_22 : f32 to vector<8x8xf32>
    %41 = arith.mulf %39, %40 : vector<8x8xf32>
    %cst_23 = arith.constant -1.000000e+30 : f32
    %42 = vector.broadcast %cst_23 : f32 to vector<8x8xf32>
    %43 = arith.select %15, %41, %42 : vector<8x8xi1>, vector<8x8xf32>
    %cst_24 = arith.constant dense<0xFF800000> : vector<8xf32>
    %44 = vector.multi_reduction <maximumf>, %43, %cst_24 [1] : vector<8x8xf32> to vector<8xf32>
    %45 = vector.shape_cast %44 : vector<8xf32> to vector<8x1xf32>
    %46 = vector.broadcast %45 : vector<8x1xf32> to vector<8x8xf32>
    %47 = arith.subf %43, %46 : vector<8x8xf32>
    %48 = math.exp %47 : vector<8x8xf32>
    %cst_25 = arith.constant dense<0.000000e+00> : vector<8xf32>
    %49 = vector.multi_reduction <add>, %48, %cst_25 [1] : vector<8x8xf32> to vector<8xf32>
    %50 = vector.shape_cast %49 : vector<8xf32> to vector<8x1xf32>
    %51 = tpu.reciprocal %50 {approx = true} : vector<8x1xf32> -> vector<8x1xf32>
    %52 = vector.broadcast %51 : vector<8x1xf32> to vector<8x8xf32>
    %53 = arith.mulf %48, %52 : vector<8x8xf32>
    %54 = vector.extract_strided_slice %12 {offsets = [0, 8], sizes = [8, 8], strides = [1, 1]} : vector<8x32xf32> to vector<8x8xf32>
    %cst_26 = arith.constant dense<0.000000e+00> : vector<8x8xf32>
    %55 = tpu.matmul %53, %54, %cst_26 {dimension_numbers = #tpu.dot_dimension_numbers<[1], [0], [0], [1], [0, 0, 1, 1], [], []>} : vector<8x8xf32>, vector<8x8xf32>, vector<8x8xf32> -> vector<8x8xf32>
    %56 = vector.extract_strided_slice %5 {offsets = [0, 16], sizes = [8, 8], strides = [1, 1]} : vector<8x32xf32> to vector<8x8xf32>
    %57 = vector.extract_strided_slice %7 {offsets = [0, 16], sizes = [8, 8], strides = [1, 1]} : vector<8x32xf32> to vector<8x8xf32>
    %58 = tpu.transpose %57, [1, 0] : vector<8x8xf32> -> vector<8x8xf32>
    %cst_27 = arith.constant dense<0.000000e+00> : vector<8x8xf32>
    %59 = tpu.matmul %56, %58, %cst_27 {dimension_numbers = #tpu.dot_dimension_numbers<[1], [0], [0], [1], [0, 0, 1, 1], [], []>} : vector<8x8xf32>, vector<8x8xf32>, vector<8x8xf32> -> vector<8x8xf32>
    %cst_28 = arith.constant 0.353553385 : f32
    %60 = vector.broadcast %cst_28 : f32 to vector<8x8xf32>
    %61 = arith.mulf %59, %60 : vector<8x8xf32>
    %cst_29 = arith.constant -1.000000e+30 : f32
    %62 = vector.broadcast %cst_29 : f32 to vector<8x8xf32>
    %63 = arith.select %15, %61, %62 : vector<8x8xi1>, vector<8x8xf32>
    %cst_30 = arith.constant dense<0xFF800000> : vector<8xf32>
    %64 = vector.multi_reduction <maximumf>, %63, %cst_30 [1] : vector<8x8xf32> to vector<8xf32>
    %65 = vector.shape_cast %64 : vector<8xf32> to vector<8x1xf32>
    %66 = vector.broadcast %65 : vector<8x1xf32> to vector<8x8xf32>
    %67 = arith.subf %63, %66 : vector<8x8xf32>
    %68 = math.exp %67 : vector<8x8xf32>
    %cst_31 = arith.constant dense<0.000000e+00> : vector<8xf32>
    %69 = vector.multi_reduction <add>, %68, %cst_31 [1] : vector<8x8xf32> to vector<8xf32>
    %70 = vector.shape_cast %69 : vector<8xf32> to vector<8x1xf32>
    %71 = tpu.reciprocal %70 {approx = true} : vector<8x1xf32> -> vector<8x1xf32>
    %72 = vector.broadcast %71 : vector<8x1xf32> to vector<8x8xf32>
    %73 = arith.mulf %68, %72 : vector<8x8xf32>
    %74 = vector.extract_strided_slice %12 {offsets = [0, 16], sizes = [8, 8], strides = [1, 1]} : vector<8x32xf32> to vector<8x8xf32>
    %cst_32 = arith.constant dense<0.000000e+00> : vector<8x8xf32>
    %75 = tpu.matmul %73, %74, %cst_32 {dimension_numbers = #tpu.dot_dimension_numbers<[1], [0], [0], [1], [0, 0, 1, 1], [], []>} : vector<8x8xf32>, vector<8x8xf32>, vector<8x8xf32> -> vector<8x8xf32>
    %76 = vector.extract_strided_slice %5 {offsets = [0, 24], sizes = [8, 8], strides = [1, 1]} : vector<8x32xf32> to vector<8x8xf32>
    %77 = vector.extract_strided_slice %7 {offsets = [0, 24], sizes = [8, 8], strides = [1, 1]} : vector<8x32xf32> to vector<8x8xf32>
    %78 = tpu.transpose %77, [1, 0] : vector<8x8xf32> -> vector<8x8xf32>
    %cst_33 = arith.constant dense<0.000000e+00> : vector<8x8xf32>
    %79 = tpu.matmul %76, %78, %cst_33 {dimension_numbers = #tpu.dot_dimension_numbers<[1], [0], [0], [1], [0, 0, 1, 1], [], []>} : vector<8x8xf32>, vector<8x8xf32>, vector<8x8xf32> -> vector<8x8xf32>
    %cst_34 = arith.constant 0.353553385 : f32
    %80 = vector.broadcast %cst_34 : f32 to vector<8x8xf32>
    %81 = arith.mulf %79, %80 : vector<8x8xf32>
    %cst_35 = arith.constant -1.000000e+30 : f32
    %82 = vector.broadcast %cst_35 : f32 to vector<8x8xf32>
    %83 = arith.select %15, %81, %82 : vector<8x8xi1>, vector<8x8xf32>
    %cst_36 = arith.constant dense<0xFF800000> : vector<8xf32>
    %84 = vector.multi_reduction <maximumf>, %83, %cst_36 [1] : vector<8x8xf32> to vector<8xf32>
    %85 = vector.shape_cast %84 : vector<8xf32> to vector<8x1xf32>
    %86 = vector.broadcast %85 : vector<8x1xf32> to vector<8x8xf32>
    %87 = arith.subf %83, %86 : vector<8x8xf32>
    %88 = math.exp %87 : vector<8x8xf32>
    %cst_37 = arith.constant dense<0.000000e+00> : vector<8xf32>
    %89 = vector.multi_reduction <add>, %88, %cst_37 [1] : vector<8x8xf32> to vector<8xf32>
    %90 = vector.shape_cast %89 : vector<8xf32> to vector<8x1xf32>
    %91 = tpu.reciprocal %90 {approx = true} : vector<8x1xf32> -> vector<8x1xf32>
    %92 = vector.broadcast %91 : vector<8x1xf32> to vector<8x8xf32>
    %93 = arith.mulf %88, %92 : vector<8x8xf32>
    %94 = vector.extract_strided_slice %12 {offsets = [0, 24], sizes = [8, 8], strides = [1, 1]} : vector<8x32xf32> to vector<8x8xf32>
    %cst_38 = arith.constant dense<0.000000e+00> : vector<8x8xf32>
    %95 = tpu.matmul %93, %94, %cst_38 {dimension_numbers = #tpu.dot_dimension_numbers<[1], [0], [0], [1], [0, 0, 1, 1], [], []>} : vector<8x8xf32>, vector<8x8xf32>, vector<8x8xf32> -> vector<8x8xf32>
    %96 = tpu.concatenate %35, %55, %75, %95 in 1 : vector<8x8xf32>, vector<8x8xf32>, vector<8x8xf32>, vector<8x8xf32> -> vector<8x32xf32>
    %97 = arith.addf %96, %1 : vector<8x32xf32>
    %cst_39 = arith.constant dense<0.000000e+00> : vector<8xf32>
    %98 = vector.multi_reduction <add>, %97, %cst_39 [1] : vector<8x32xf32> to vector<8xf32>
    %99 = vector.shape_cast %98 : vector<8xf32> to vector<8x1xf32>
    %cst_40 = arith.constant 3.200000e+01 : f32
    %100 = vector.broadcast %cst_40 : f32 to vector<8x1xf32>
    %101 = arith.divf %99, %100 : vector<8x1xf32>
    %102 = vector.broadcast %101 : vector<8x1xf32> to vector<8x32xf32>
    %103 = arith.subf %97, %102 : vector<8x32xf32>
    %104 = arith.mulf %103, %103 : vector<8x32xf32>
    %cst_41 = arith.constant dense<0.000000e+00> : vector<8xf32>
    %105 = vector.multi_reduction <add>, %104, %cst_41 [1] : vector<8x32xf32> to vector<8xf32>
    %106 = vector.shape_cast %105 : vector<8xf32> to vector<8x1xf32>
    %cst_42 = arith.constant 3.200000e+01 : f32
    %107 = vector.broadcast %cst_42 : f32 to vector<8x1xf32>
    %108 = arith.divf %106, %107 : vector<8x1xf32>
    %109 = vector.broadcast %101 : vector<8x1xf32> to vector<8x32xf32>
    %110 = arith.subf %97, %109 : vector<8x32xf32>
    %cst_43 = arith.constant 9.99999974E-6 : f32
    %111 = vector.broadcast %cst_43 : f32 to vector<8x1xf32>
    %112 = arith.addf %108, %111 : vector<8x1xf32>
    %113 = math.rsqrt %112 : vector<8x1xf32>
    %114 = vector.broadcast %113 : vector<8x1xf32> to vector<8x32xf32>
    %115 = arith.mulf %110, %114 : vector<8x32xf32>
    %c0_44 = arith.constant 0 : index
    %c0_45 = arith.constant 0 : index
    %116 = vector.load %arg7[%c0_44, %c0_45] : memref<1x32xf32, #tpu.memory_space<vmem>>, vector<1x32xf32>
    %117 = vector.broadcast %116 : vector<1x32xf32> to vector<8x32xf32>
    %118 = arith.mulf %115, %117 : vector<8x32xf32>
    %c0_46 = arith.constant 0 : index
    %c0_47 = arith.constant 0 : index
    %119 = vector.load %arg8[%c0_46, %c0_47] : memref<1x32xf32, #tpu.memory_space<vmem>>, vector<1x32xf32>
    %120 = vector.broadcast %119 : vector<1x32xf32> to vector<8x32xf32>
    %121 = arith.addf %118, %120 : vector<8x32xf32>
    %c0_48 = arith.constant 0 : index
    %c0_49 = arith.constant 0 : index
    %c0_50 = arith.constant 0 : index
    %122 = vector.load %arg9[%c0_48, %c0_49, %c0_50] : memref<1x8x32xf32, #tpu.memory_space<vmem>>, vector<1x8x32xf32>
    %123 = vector.shape_cast %122 : vector<1x8x32xf32> to vector<8x32xf32>
    %124 = vector.shape_cast %121 : vector<8x32xf32> to vector<1x8x32xf32>
    tpu.vector_store %arg9[%c0_48, %c0_49, %c0_50], %124 {strides = array<i32>} : memref<1x8x32xf32, #tpu.memory_space<vmem>>, vector<1x8x32xf32>,
    return
  }
  func.func @transform_0(%arg0: i32) -> (i32, i32, i32) {
    %c0_i32 = arith.constant 0 : i32
    %c0_i32_0 = arith.constant 0 : i32
    %c0_i32_1 = arith.constant 0 : i32
    return %arg0, %c0_i32, %c0_i32_0 : i32, i32, i32
  }
  func.func @transform_1(%arg0: i32) -> (i32, i32, i32) {
    %c0_i32 = arith.constant 0 : i32
    %c0_i32_0 = arith.constant 0 : i32
    %c0_i32_1 = arith.constant 0 : i32
    return %arg0, %c0_i32, %c0_i32_0 : i32, i32, i32
  }
  func.func @transform_2(%arg0: i32) -> (i32, i32) {
    %c0_i32 = arith.constant 0 : i32
    %c0_i32_0 = arith.constant 0 : i32
    %c0_i32_1 = arith.constant 0 : i32
    return %c0_i32, %c0_i32_0 : i32, i32
  }
  func.func @transform_3(%arg0: i32) -> (i32, i32) {
    %c0_i32 = arith.constant 0 : i32
    %c0_i32_0 = arith.constant 0 : i32
    %c0_i32_1 = arith.constant 0 : i32
    return %c0_i32, %c0_i32_0 : i32, i32
  }
  func.func @transform_4(%arg0: i32) -> (i32, i32) {
    %c0_i32 = arith.constant 0 : i32
    %c0_i32_0 = arith.constant 0 : i32
    %c0_i32_1 = arith.constant 0 : i32
    return %c0_i32, %c0_i32_0 : i32, i32
  }
  func.func @transform_5(%arg0: i32) -> (i32, i32) {
    %c0_i32 = arith.constant 0 : i32
    %c0_i32_0 = arith.constant 0 : i32
    %c0_i32_1 = arith.constant 0 : i32
    return %c0_i32, %c0_i32_0 : i32, i32
  }
  func.func @transform_6(%arg0: i32) -> (i32, i32) {
    %c0_i32 = arith.constant 0 : i32
    %c0_i32_0 = arith.constant 0 : i32
    %c0_i32_1 = arith.constant 0 : i32
    return %c0_i32, %c0_i32_0 : i32, i32
  }
  func.func @transform_7(%arg0: i32) -> (i32, i32) {
    %c0_i32 = arith.constant 0 : i32
    %c0_i32_0 = arith.constant 0 : i32
    %c0_i32_1 = arith.constant 0 : i32
    return %c0_i32, %c0_i32_0 : i32, i32
  }
  func.func @transform_8(%arg0: i32) -> (i32, i32, i32) {
    %c0_i32 = arith.constant 0 : i32
    %c0_i32_0 = arith.constant 0 : i32
    %c0_i32_1 = arith.constant 0 : i32
    return %arg0, %c0_i32, %c0_i32_0 : i32, i32, i32
  }
}

</mosaic_0001>

<llo_original>
// kernel: tpu_custom_call.1
$region0: #{tpu_custom_call.1}
  #allocation0 [shape = 'u32[]', space=smem, size = 0x4, offset = 0x4, fixed_abs, tag = 'smem constant byte address 0x4 - core index']
  #allocation1 [shape = 'u32[144,128]{1,0:T(1,128)}', space=vmem, size = 0x12000, scoped, tag = 'internal scratch']
  %s0 = inlined_call_operand.hbm [shape: f32[2,8,32], index: 0, kind: input, shape index: {}]
  %s1 = inlined_call_operand.hbm [shape: f32[2,8,32], index: 1, kind: input, shape index: {}]
  %s2 = inlined_call_operand.hbm [shape: f32[32,32], index: 2, kind: input, shape index: {}]
  %s3 = inlined_call_operand.hbm [shape: f32[32,32], index: 3, kind: input, shape index: {}]
  %s4 = inlined_call_operand.hbm [shape: f32[32,32], index: 4, kind: input, shape index: {}]
  %s5 = inlined_call_operand.vmem [shape: f32[1,32], index: 5, kind: input, shape index: {}]
  %s6 = inlined_call_operand.vmem [shape: f32[1,32], index: 6, kind: input, shape index: {}]
  %s7 = inlined_call_operand.vmem [shape: f32[1,32], index: 7, kind: input, shape index: {}]
  %s8 = inlined_call_operand.hbm [shape: f32[2,8,32], index: 8, kind: output, shape index: {}]
  %s9 = sld [smem:[#allocation0]]
  $region85: #{tpu_custom_call.1} parent=0
    _
  %s11 = ssub.s32 1, %s9
  %s12 = scalar_select 0, %s11, %s9
  $region1: #{tpu_custom_call.1} parent=0
    #allocation2 [shape = 'u8[8192]{0}', space=vmem, size = 0x2000, scoped, tag = 'input window, operand 0']
    #allocation3 [shape = 's32[2]{0}', space=sflag, size = 0x8, scoped, tag = 'scoped memory for tpu_custom_call.1']
    #allocation4 [shape = 's32[2]{0}', space=sflag, size = 0x8, scoped, tag = 'scoped memory for tpu_custom_call.1']
    #allocation5 [shape = 'u8[8192]{0}', space=vmem, size = 0x2000, scoped, tag = 'input window, operand 1']
    #allocation6 [shape = 's32[2]{0}', space=sflag, size = 0x8, scoped, tag = 'scoped memory for tpu_custom_call.1']
    #allocation7 [shape = 'u8[16384]{0}', space=vmem, size = 0x4000, scoped, tag = 'input window, operand 2, single buffered']
    #allocation8 [shape = 'u8[16384]{0}', space=vmem, size = 0x4000, scoped, tag = 'input window, operand 3, single buffered']
    #allocation9 [shape = 's32[1]{0}', space=sflag, size = 0x4, scoped, tag = 'scoped memory for tpu_custom_call.1']
    #allocation10 [shape = 'u8[16384]{0}', space=vmem, size = 0x4000, scoped, tag = 'input window, operand 4, single buffered']
    #allocation11 [shape = 'u8[8192]{0}', space=vmem, size = 0x2000, scoped, tag = 'output window, operand 0']
    %13 = vsyncpa [#allocation3], 0
    %s14 = scalar_lea.sflag [#allocation3], 1
    %15 = vsyncpa %s14, 0
    %16 = vsyncpa [#allocation6], 0
    %s17 = scalar_lea.sflag [#allocation6], 1
    %18 = vsyncpa %s17, 0
    %19 = vsyncpa [#allocation9], 0
    %20 = vsyncpa [#allocation4], 0
    %s21 = scalar_lea.sflag [#allocation4], 1
    %22 = vsyncpa %s21, 0
    loop: start=0, step=1, limit=4
    $region2: #{tpu_custom_call.1} parent=1 // loop_pre_header
      _
    $region3: #{tpu_custom_call.1} parent=1 // loop_header
      %s24 = sphi 0, %s28
      %p25 = scmp.ge.s32.totalorder %s24, 4
      %s34 = sphi 0, %s36
      %s37 = sphi 0, %s34
      %s38 = sphi 0, %s37
      %s54 = sphi 0, %s38
      %s60 = sphi 0, %s62
      %s63 = sphi 0, %s60
      %s64 = sphi 0, %s63
      %s80 = sphi 0, %s64
      %s84 = sphi 0, %s84
      %s86 = sphi 0, %s84
      %s87 = sphi 0, %s86
      %s101 = sphi 0, %s87
      %s105 = sphi 0, %s105
      %s107 = sphi 0, %s105
      %s108 = sphi 0, %s107
      %s122 = sphi 0, %s108
      %s126 = sphi 0, %s126
      %s128 = sphi 0, %s126
      %s129 = sphi 0, %s128
      %s143 = sphi 0, %s129
      %s147 = sphi 0, %s147
      %s149 = sphi 0, %s147
      %s150 = sphi 0, %s149
      %s164 = sphi 0, %s150
      %s168 = sphi 0, %s168
      %s170 = sphi 0, %s168
      %s171 = sphi 0, %s170
      %s185 = sphi 0, %s171
      %s189 = sphi 0, %s189
      %s191 = sphi 0, %s189
      %s192 = sphi 0, %s191
      %s206 = sphi 0, %s192
      %s212 = sphi 0, %s214
      %s215 = sphi 0, %s212
      %s216 = sphi 0, %s215
      %s232 = sphi 0, %s216
    $region4: #{tpu_custom_call.1} parent=1 // loop_header_branch
      %27 = sbr.rel (%p25) target = $region8
    $region5: #{tpu_custom_call.1} parent=1 // loop_body
      %s29 = ssub.s32 %s24, 1
      %s30 = ssub.s32 %s24, 2
      %s31 = sadd.s32 %s24, 1
      %s32 = ssub.s32 %s24, %s31
      %p33 = scmp.eq.s32.totalorder %s32, 0
      %s35 = sadd.s32 %s34, 1
      %s36 = scalar_select %p33, %s34, %s35
      %p39 = pneg %p33
      %p40 = scmp.eq.s32.totalorder %s24, 1
      %p41 = por %p39, %p40
      %p42 = scmp.ne.s32.totalorder %s34, %s37
      %p43 = scmp.eq.s32.totalorder %s24, 0
      %p44 = por %p42, %p43
      %p45 = scmp.ne.s32.totalorder %s34, %s37
      %p46 = scmp.eq.s32.totalorder %s29, 1
      %p47 = por %p45, %p46
      %p48 = scmp.ne.s32.totalorder %s37, %s38
      %p49 = scmp.eq.s32.totalorder %s29, 0
      %p50 = por %p48, %p49
      %p51 = scmp.ne.s32.totalorder %s37, %s38
      %p52 = scmp.eq.s32.totalorder %s30, 1
      %p53 = por %p51, %p52
      %p55 = scmp.ne.s32.totalorder %s38, %s54
      %p56 = scmp.eq.s32.totalorder %s30, 0
      %p57 = por %p55, %p56
      %s58 = ssub.s32 %s24, %s31
      %p59 = scmp.eq.s32.totalorder %s58, 0
      %s61 = sadd.s32 %s60, 1
      %s62 = scalar_select %p59, %s60, %s61
      %p65 = pneg %p59
      %p66 = scmp.eq.s32.totalorder %s24, 1
      %p67 = por %p65, %p66
      %p68 = scmp.ne.s32.totalorder %s60, %s63
      %p69 = scmp.eq.s32.totalorder %s24, 0
      %p70 = por %p68, %p69
      %p71 = scmp.ne.s32.totalorder %s60, %s63
      %p72 = scmp.eq.s32.totalorder %s29, 1
      %p73 = por %p71, %p72
      %p74 = scmp.ne.s32.totalorder %s63, %s64
      %p75 = scmp.eq.s32.totalorder %s29, 0
      %p76 = por %p74, %p75
      %p77 = scmp.ne.s32.totalorder %s63, %s64
      %p78 = scmp.eq.s32.totalorder %s30, 1
      %p79 = por %p77, %p78
      %p81 = scmp.ne.s32.totalorder %s64, %s80
      %p82 = scmp.eq.s32.totalorder %s30, 0
      %p83 = por %p81, %p82
      %s85 = sadd.s32 %s84, 1
      %p88 = scmp.eq.s32.totalorder %s24, 1
      %p89 = scmp.ne.s32.totalorder %s84, %s86
      %p90 = scmp.eq.s32.totalorder %s24, 0
      %p91 = por %p89, %p90
      %p92 = scmp.ne.s32.totalorder %s84, %s86
      %p93 = scmp.eq.s32.totalorder %s29, 1
      %p94 = por %p92, %p93
      %p95 = scmp.ne.s32.totalorder %s86, %s87
      %p96 = scmp.eq.s32.totalorder %s29, 0
      %p97 = por %p95, %p96
      %p98 = scmp.ne.s32.totalorder %s86, %s87
      %p99 = scmp.eq.s32.totalorder %s30, 1
      %p100 = por %p98, %p99
      %p102 = scmp.ne.s32.totalorder %s87, %s101
      %p103 = scmp.eq.s32.totalorder %s30, 0
      %p104 = por %p102, %p103
      %s106 = sadd.s32 %s105, 1
      %p109 = scmp.eq.s32.totalorder %s24, 1
      %p110 = scmp.ne.s32.totalorder %s105, %s107
      %p111 = scmp.eq.s32.totalorder %s24, 0
      %p112 = por %p110, %p111
      %p113 = scmp.ne.s32.totalorder %s105, %s107
      %p114 = scmp.eq.s32.totalorder %s29, 1
      %p115 = por %p113, %p114
      %p116 = scmp.ne.s32.totalorder %s107, %s108
      %p117 = scmp.eq.s32.totalorder %s29, 0
      %p118 = por %p116, %p117
      %p119 = scmp.ne.s32.totalorder %s107, %s108
      %p120 = scmp.eq.s32.totalorder %s30, 1
      %p121 = por %p119, %p120
      %p123 = scmp.ne.s32.totalorder %s108, %s122
      %p124 = scmp.eq.s32.totalorder %s30, 0
      %p125 = por %p123, %p124
      %s127 = sadd.s32 %s126, 1
      %p130 = scmp.eq.s32.totalorder %s24, 1
      %p131 = scmp.ne.s32.totalorder %s126, %s128
      %p132 = scmp.eq.s32.totalorder %s24, 0
      %p133 = por %p131, %p132
      %p134 = scmp.ne.s32.totalorder %s126, %s128
      %p135 = scmp.eq.s32.totalorder %s29, 1
      %p136 = por %p134, %p135
      %p137 = scmp.ne.s32.totalorder %s128, %s129
      %p138 = scmp.eq.s32.totalorder %s29, 0
      %p139 = por %p137, %p138
      %p140 = scmp.ne.s32.totalorder %s128, %s129
      %p141 = scmp.eq.s32.totalorder %s30, 1
      %p142 = por %p140, %p141
      %p144 = scmp.ne.s32.totalorder %s129, %s143
      %p145 = scmp.eq.s32.totalorder %s30, 0
      %p146 = por %p144, %p145
      %s148 = sadd.s32 %s147, 1
      %p151 = scmp.eq.s32.totalorder %s24, 1
      %p152 = scmp.ne.s32.totalorder %s147, %s149
      %p153 = scmp.eq.s32.totalorder %s24, 0
      %p154 = por %p152, %p153
      %p155 = scmp.ne.s32.totalorder %s147, %s149
      %p156 = scmp.eq.s32.totalorder %s29, 1
      %p157 = por %p155, %p156
      %p158 = scmp.ne.s32.totalorder %s149, %s150
      %p159 = scmp.eq.s32.totalorder %s29, 0
      %p160 = por %p158, %p159
      %p161 = scmp.ne.s32.totalorder %s149, %s150
      %p162 = scmp.eq.s32.totalorder %s30, 1
      %p163 = por %p161, %p162
      %p165 = scmp.ne.s32.totalorder %s150, %s164
      %p166 = scmp.eq.s32.totalorder %s30, 0
      %p167 = por %p165, %p166
      %s169 = sadd.s32 %s168, 1
      %p172 = scmp.eq.s32.totalorder %s24, 1
      %p173 = scmp.ne.s32.totalorder %s168, %s170
      %p174 = scmp.eq.s32.totalorder %s24, 0
      %p175 = por %p173, %p174
      %p176 = scmp.ne.s32.totalorder %s168, %s170
      %p177 = scmp.eq.s32.totalorder %s29, 1
      %p178 = por %p176, %p177
      %p179 = scmp.ne.s32.totalorder %s170, %s171
      %p180 = scmp.eq.s32.totalorder %s29, 0
      %p181 = por %p179, %p180
      %p182 = scmp.ne.s32.totalorder %s170, %s171
      %p183 = scmp.eq.s32.totalorder %s30, 1
      %p184 = por %p182, %p183
      %p186 = scmp.ne.s32.totalorder %s171, %s185
      %p187 = scmp.eq.s32.totalorder %s30, 0
      %p188 = por %p186, %p187
      %s190 = sadd.s32 %s189, 1
      %p193 = scmp.eq.s32.totalorder %s24, 1
      %p194 = scmp.ne.s32.totalorder %s189, %s191
      %p195 = scmp.eq.s32.totalorder %s24, 0
      %p196 = por %p194, %p195
      %p197 = scmp.ne.s32.totalorder %s189, %s191
      %p198 = scmp.eq.s32.totalorder %s29, 1
      %p199 = por %p197, %p198
      %p200 = scmp.ne.s32.totalorder %s191, %s192
      %p201 = scmp.eq.s32.totalorder %s29, 0
      %p202 = por %p200, %p201
      %p203 = scmp.ne.s32.totalorder %s191, %s192
      %p204 = scmp.eq.s32.totalorder %s30, 1
      %p205 = por %p203, %p204
      %p207 = scmp.ne.s32.totalorder %s192, %s206
      %p208 = scmp.eq.s32.totalorder %s30, 0
      %p209 = por %p207, %p208
      %s210 = ssub.s32 %s24, %s31
      %p211 = scmp.eq.s32.totalorder %s210, 0
      %s213 = sadd.s32 %s212, 1
      %s214 = scalar_select %p211, %s212, %s213
      %p217 = pneg %p211
      %p218 = scmp.eq.s32.totalorder %s24, 1
      %p219 = por %p217, %p218
      %p220 = scmp.ne.s32.totalorder %s212, %s215
      %p221 = scmp.eq.s32.totalorder %s24, 0
      %p222 = por %p220, %p221
      %p223 = scmp.ne.s32.totalorder %s212, %s215
      %p224 = scmp.eq.s32.totalorder %s29, 1
      %p225 = por %p223, %p224
      %p226 = scmp.ne.s32.totalorder %s215, %s216
      %p227 = scmp.eq.s32.totalorder %s29, 0
      %p228 = por %p226, %p227
      %p229 = scmp.ne.s32.totalorder %s215, %s216
      %p230 = scmp.eq.s32.totalorder %s30, 1
      %p231 = por %p229, %p230
      %p233 = scmp.ne.s32.totalorder %s216, %s232
      %p234 = scmp.eq.s32.totalorder %s30, 0
      %p235 = por %p233, %p234
      %p236 = scmp.le.s32.totalorder 1, %s24
      %p237 = scmp.lt.s32.totalorder %s24, 3
      %p238 = pnand %p236, %p237
      %p239 = pneg %p238
      // Predicated region
      $region9: #{tpu_custom_call.1} parent=5 // pred_check
        _
      $region10: #{tpu_custom_call.1} parent=5 // pred_check_branch
        %241 = sbr.rel (%p238) target = $region12
      $region11: #{tpu_custom_call.1} parent=5 // pred_region
        %s242 = ssub.s32 %s24, 1
        // Predicated region
        $region13: #{tpu_custom_call.1} parent=11 // pred_check
          %p243 = pneg %p97
        $region14: #{tpu_custom_call.1} parent=11 // pred_check_branch
          %245 = sbr.rel (%p243) target = $region16
        $region15: #{tpu_custom_call.1} parent=11 // pred_region
          %s247 = ssub.s32 512, 512
          %248 = vsyncadd [#allocation6], %s247
          %s249 = sshll.u32 [#allocation7], 4
          %s250 = int_to_ptr.vmem [resolvable:$true] %s249
          %255 = dma.hbm_to_vmem [thread:$0]  %s2, 512, %s250, [#allocation6], 128, 128, 8
        $region16: #{tpu_custom_call.1} parent=11 // pred_fallthru
          _
        // Predicated region
        $region17: #{tpu_custom_call.1} parent=11 // pred_check
          %p256 = pneg %p118
        $region18: #{tpu_custom_call.1} parent=11 // pred_check_branch
          %258 = sbr.rel (%p256) target = $region20
        $region19: #{tpu_custom_call.1} parent=11 // pred_region
          %s260 = ssub.s32 512, 512
          %261 = vsyncadd [#allocation9], %s260
          %s262 = sshll.u32 [#allocation8], 4
          %s263 = int_to_ptr.vmem [resolvable:$true] %s262
          %268 = dma.hbm_to_vmem [thread:$0]  %s3, 512, %s263, [#allocation9], 128, 128, 8
        $region20: #{tpu_custom_call.1} parent=11 // pred_fallthru
          _
        // Predicated region
        $region21: #{tpu_custom_call.1} parent=11 // pred_check
          %p269 = pneg %p139
        $region22: #{tpu_custom_call.1} parent=11 // pred_check_branch
          %271 = sbr.rel (%p269) target = $region24
        $region23: #{tpu_custom_call.1} parent=11 // pred_region
          %s273 = ssub.s32 512, 512
          %274 = vsyncadd [#allocation9], %s273
          %s275 = sshll.u32 [#allocation10], 4
          %s276 = int_to_ptr.vmem [resolvable:$true] %s275
          %281 = dma.hbm_to_vmem [thread:$0]  %s4, 512, %s276, [#allocation9], 128, 128, 8
        $region24: #{tpu_custom_call.1} parent=11 // pred_fallthru
          _
        // Predicated region
        $region25: #{tpu_custom_call.1} parent=11 // pred_check
          %p282 = pneg %p160
        $region26: #{tpu_custom_call.1} parent=11 // pred_check_branch
          %284 = sbr.rel (%p282) target = $region28
        $region27: #{tpu_custom_call.1} parent=11 // pred_region
          _
        $region28: #{tpu_custom_call.1} parent=11 // pred_fallthru
          _
        // Predicated region
        $region29: #{tpu_custom_call.1} parent=11 // pred_check
          %p285 = pneg %p181
        $region30: #{tpu_custom_call.1} parent=11 // pred_check_branch
          %287 = sbr.rel (%p285) target = $region32
        $region31: #{tpu_custom_call.1} parent=11 // pred_region
          _
        $region32: #{tpu_custom_call.1} parent=11 // pred_fallthru
          _
        // Predicated region
        $region33: #{tpu_custom_call.1} parent=11 // pred_check
          %p288 = pneg %p202
        $region34: #{tpu_custom_call.1} parent=11 // pred_check_branch
          %290 = sbr.rel (%p288) target = $region36
        $region35: #{tpu_custom_call.1} parent=11 // pred_region
          _
        $region36: #{tpu_custom_call.1} parent=11 // pred_fallthru
          _
      $region12: #{tpu_custom_call.1} parent=5 // pred_fallthru
        _
      %p291 = scmp.lt.s32.totalorder %s24, 2
      // Predicated region
      $region37: #{tpu_custom_call.1} parent=5 // pred_check
        %p292 = pneg %p291
      $region38: #{tpu_custom_call.1} parent=5 // pred_check_branch
        %294 = sbr.rel (%p292) target = $region40
      $region39: #{tpu_custom_call.1} parent=5 // pred_region
        // Predicated region
        $region41: #{tpu_custom_call.1} parent=39 // pred_check
          %p295 = pneg %p44
        $region42: #{tpu_custom_call.1} parent=39 // pred_check_branch
          %297 = sbr.rel (%p295) target = $region44
        $region43: #{tpu_custom_call.1} parent=39 // pred_region
          %s298 = sand.u32 %s34, 1
          %s299 = scalar_lea.sflag [#allocation3], %s298
          %s300 = sand.u32 %s34, 1
          %s301 = smul.addr %s300, 8
          %s302 = scalar_lea.vmem [#allocation2], %s301
          %s304 = ssub.s32 128, 128
          %305 = vsyncadd %s299, %s304
          %s306 = smul.addr %s24, 128
          %s307 = scalar_lea.hbm %s0, %s306
          %s309 = sshll.u32 %s302, 4
          %s310 = int_to_ptr.vmem [resolvable:$true] %s309
          %312 = dma.hbm_to_vmem [thread:$0]  %s307, 128, %s310, %s299
        $region44: #{tpu_custom_call.1} parent=39 // pred_fallthru
          _
        // Predicated region
        $region45: #{tpu_custom_call.1} parent=39 // pred_check
          %p313 = pneg %p70
        $region46: #{tpu_custom_call.1} parent=39 // pred_check_branch
          %315 = sbr.rel (%p313) target = $region48
        $region47: #{tpu_custom_call.1} parent=39 // pred_region
          %s316 = sand.u32 %s24, 1
          %s317 = scalar_lea.sflag [#allocation6], %s316
          %s318 = sand.u32 %s60, 1
          %s319 = smul.addr %s318, 8
          %s320 = scalar_lea.vmem [#allocation5], %s319
          %s322 = ssub.s32 128, 128
          %323 = vsyncadd %s317, %s322
          %s324 = smul.addr %s24, 128
          %s325 = scalar_lea.hbm %s1, %s324
          %s327 = sshll.u32 %s320, 4
          %s328 = int_to_ptr.vmem [resolvable:$true] %s327
          %330 = dma.hbm_to_vmem [thread:$0]  %s325, 128, %s328, %s317
        $region48: #{tpu_custom_call.1} parent=39 // pred_fallthru
          _
      $region40: #{tpu_custom_call.1} parent=5 // pred_fallthru
        _
      %p331 = scmp.le.s32.totalorder 1, %s24
      %p332 = scmp.lt.s32.totalorder %s24, 3
      %p333 = pnand %p331, %p332
      %p334 = pneg %p333
      // Predicated region
      $region49: #{tpu_custom_call.1} parent=5 // pred_check
        _
      $region50: #{tpu_custom_call.1} parent=5 // pred_check_branch
        %336 = sbr.rel (%p333) target = $region52
      $region51: #{tpu_custom_call.1} parent=5 // pred_region
        %s337 = ssub.s32 %s24, 1
        %s338 = sand.u32 %s37, 1
        %s339 = scalar_lea.sflag [#allocation3], %s338
        %s340 = sand.u32 %s37, 1
        %s341 = smul.addr %s340, 8
        %s342 = scalar_lea.vmem [#allocation2], %s341
        // Predicated region
        $region53: #{tpu_custom_call.1} parent=51 // pred_check
          %p343 = pneg %p50
        $region54: #{tpu_custom_call.1} parent=51 // pred_check_branch
          %345 = sbr.rel (%p343) target = $region56
        $region55: #{tpu_custom_call.1} parent=51 // pred_region
          %346 = dma.done %s339, 128
        $region56: #{tpu_custom_call.1} parent=51 // pred_fallthru
          _
        %s347 = sand.u32 %s29, 1
        %s348 = scalar_lea.sflag [#allocation6], %s347
        %s349 = sand.u32 %s63, 1
        %s350 = smul.addr %s349, 8
        %s351 = scalar_lea.vmem [#allocation5], %s350
        // Predicated region
        $region57: #{tpu_custom_call.1} parent=51 // pred_check
          %p352 = pneg %p76
        $region58: #{tpu_custom_call.1} parent=51 // pred_check_branch
          %354 = sbr.rel (%p352) target = $region60
        $region59: #{tpu_custom_call.1} parent=51 // pred_region
          %355 = dma.done %s348, 128
        $region60: #{tpu_custom_call.1} parent=51 // pred_fallthru
          _
        // Predicated region
        $region61: #{tpu_custom_call.1} parent=51 // pred_check
          %p356 = pneg %p97
        $region62: #{tpu_custom_call.1} parent=51 // pred_check_branch
          %358 = sbr.rel (%p356) target = $region64
        $region63: #{tpu_custom_call.1} parent=51 // pred_region
          %359 = dma.done [#allocation6], 512
        $region64: #{tpu_custom_call.1} parent=51 // pred_fallthru
          _
        // Predicated region
        $region65: #{tpu_custom_call.1} parent=51 // pred_check
          %p360 = pneg %p118
        $region66: #{tpu_custom_call.1} parent=51 // pred_check_branch
          %362 = sbr.rel (%p360) target = $region68
        $region67: #{tpu_custom_call.1} parent=51 // pred_region
          %363 = dma.done [#allocation9], 512
        $region68: #{tpu_custom_call.1} parent=51 // pred_fallthru
          _
        // Predicated region
        $region69: #{tpu_custom_call.1} parent=51 // pred_check
          %p364 = pneg %p139
        $region70: #{tpu_custom_call.1} parent=51 // pred_check_branch
          %366 = sbr.rel (%p364) target = $region72
        $region71: #{tpu_custom_call.1} parent=51 // pred_region
          %367 = dma.done [#allocation9], 512
        $region72: #{tpu_custom_call.1} parent=51 // pred_fallthru
          _
        %s368 = sand.u32 %s37, 1
        %s369 = scalar_lea.sflag [#allocation3], %s368
        %s370 = sand.u32 %s37, 1
        %s371 = smul.addr %s370, 8
        %s372 = scalar_lea.vmem [#allocation2], %s371
        %p373 = pneg %p50
        %p374 = pneg %p47
        %s375 = sand.u32 %s29, 1
        %s376 = scalar_lea.sflag [#allocation6], %s375
        %s377 = sand.u32 %s63, 1
        %s378 = smul.addr %s377, 8
        %s379 = scalar_lea.vmem [#allocation5], %s378
        %p380 = pneg %p76
        %p381 = pneg %p73
        %p382 = pneg %p97
        %p383 = pneg %p94
        %p384 = pneg %p118
        %p385 = pneg %p115
        %p386 = pneg %p139
        %p387 = pneg %p136
        %p388 = pneg %p160
        %p389 = pneg %p157
        %p390 = pneg %p181
        %p391 = pneg %p178
        %p392 = pneg %p202
        %p393 = pneg %p199
        %p394 = pneg %p228
        %p395 = pneg %p225
        %s396 = sand.u32 %s215, 1
        %s397 = scalar_lea.sflag [#allocation4], %s396
        %s398 = sand.u32 %s215, 1
        %s399 = smul.addr %s398, 8
        %s400 = scalar_lea.vmem [#allocation11], %s399
        %v401 = vld [vmem:[%s342] sm:$0xff]
        %v402 = vld [vmem:[%s351] sm:$0xff]
        %v403 = vld [vmem:[#allocation7] sm:$0xff]
        %v404 = vld [vmem:[#allocation7 + $0x8] sm:$0xff]
        %v405 = vld [vmem:[#allocation7 + $0x10] sm:$0xff]
        %v406 = vld [vmem:[#allocation7 + $0x18] sm:$0xff]
        %vm407 = vcmask 261120
        %v409 = vsel %vm407, %v401, 0
        %411 = vmatprep.subr.mxu0 0.0
        %412 = vmatpush1.msra.mxu0 %v403
        %413 = vmatprep.subr.mxu0 0.0
        %414 = vmatpush1.msra.mxu0 %v404
        %415 = vmatprep.subr.mxu0 0.0
        %416 = vmatpush1.msra.mxu0 %v405
        %417 = vmatprep.subr.mxu0 0.0
        %418 = vmatpush1.msra.mxu0 %v406
        %419 = vmatprep.subr.mxu0 0.0
        %420 = vmatpush1.msra.mxu0 0.0
        %421 = vmatprep.subr.mxu0 0.0
        %422 = vmatpush1.msra.mxu0 0.0
        %423 = vmatprep.subr.mxu0 0.0
        %424 = vmatpush1.msra.mxu0 0.0
        %425 = vmatprep.subr.mxu0 0.0
        %426 = vmatpush1.msra.mxu0 0.0
        %427 = vmatprep.subr.mxu0 0.0
        %428 = vmatpush1.msra.mxu0 0.0
        %429 = vmatprep.subr.mxu0 0.0
        %430 = vmatpush1.msra.mxu0 0.0
        %431 = vmatprep.subr.mxu0 0.0
        %432 = vmatpush1.msra.mxu0 0.0
        %433 = vmatprep.subr.mxu0 0.0
        %434 = vmatpush1.msra.mxu0 0.0
        %435 = vmatprep.subr.mxu0 0.0
        %436 = vmatpush1.msra.mxu0 0.0
        %437 = vmatprep.subr.mxu0 0.0
        %438 = vmatpush1.msra.mxu0 0.0
        %439 = vmatprep.subr.mxu0 0.0
        %440 = vmatpush1.msra.mxu0 0.0
        %441 = vmatprep.subr.mxu0 0.0
        %442 = vmatpush1.msra.mxu0 0.0
        %443 = vmatprep.subr.mxu0 0.0
        %444 = vmatpush1.msra.mxu0 0.0
        %445 = vmatprep.subr.mxu0 0.0
        %446 = vmatpush1.msra.mxu0 0.0
        %447 = vmatprep.subr.mxu0 0.0
        %448 = vmatpush1.msra.mxu0 0.0
        %449 = vmatprep.subr.mxu0 0.0
        %450 = vmatpush1.msra.mxu0 0.0
        %451 = vmatprep.subr.mxu0 0.0
        %452 = vmatpush1.msra.mxu0 0.0
        %453 = vmatprep.subr.mxu0 0.0
        %454 = vmatpush1.msra.mxu0 0.0
        %455 = vmatprep.subr.mxu0 0.0
        %456 = vmatpush1.msra.mxu0 0.0
        %457 = vmatprep.subr.mxu0 0.0
        %458 = vmatpush1.msra.mxu0 0.0
        %459 = vmatprep.subr.mxu0 0.0
        %460 = vmatpush1.msra.mxu0 0.0
        %461 = vmatprep.subr.mxu0 0.0
        %462 = vmatpush1.msra.mxu0 0.0
        %463 = vmatprep.subr.mxu0 0.0
        %464 = vmatpush1.msra.mxu0 0.0
        %465 = vmatprep.subr.mxu0 0.0
        %466 = vmatpush1.msra.mxu0 0.0
        %467 = vmatprep.subr.mxu0 0.0
        %468 = vmatpush1.msra.mxu0 0.0
        %469 = vmatprep.subr.mxu0 0.0
        %470 = vmatpush1.msra.mxu0 0.0
        %471 = vmatprep.subr.mxu0 0.0
        %472 = vmatpush1.msra.mxu0 0.0
        %473 = vmatprep.subr.mxu0 0.0
        %474 = vmatpush1.msra.mxu0 0.0
        %475 = vmatprep.mubr.f32.mxu0 0.0
        %476 = vmatmul.mubr.f32.gmra.mrb[0].mxu0 %v409
        %v477 = vpop.f32.mrb[0].mxu0
        %v478 = vadd.f32 0.0, %v477
        %v479 = vpop.f32.mrb[0].mxu0
        %480 = vdwg.mxu0
        %v481 = vld [vmem:[#allocation8] sm:$0xff]
        %v482 = vld [vmem:[#allocation8 + $0x8] sm:$0xff]
        %v483 = vld [vmem:[#allocation8 + $0x10] sm:$0xff]
        %v484 = vld [vmem:[#allocation8 + $0x18] sm:$0xff]
        %v486 = vsel %vm407, %v402, 0
        %488 = vmatprep.subr.mxu0 0.0
        %489 = vmatpush1.msra.mxu0 %v481
        %490 = vmatprep.subr.mxu0 0.0
        %491 = vmatpush1.msra.mxu0 %v482
        %492 = vmatprep.subr.mxu0 0.0
        %493 = vmatpush1.msra.mxu0 %v483
        %494 = vmatprep.subr.mxu0 0.0
        %495 = vmatpush1.msra.mxu0 %v484
        %496 = vmatprep.subr.mxu0 0.0
        %497 = vmatpush1.msra.mxu0 0.0
        %498 = vmatprep.subr.mxu0 0.0
        %499 = vmatpush1.msra.mxu0 0.0
        %500 = vmatprep.subr.mxu0 0.0
        %501 = vmatpush1.msra.mxu0 0.0
        %502 = vmatprep.subr.mxu0 0.0
        %503 = vmatpush1.msra.mxu0 0.0
        %504 = vmatprep.subr.mxu0 0.0
        %505 = vmatpush1.msra.mxu0 0.0
        %506 = vmatprep.subr.mxu0 0.0
        %507 = vmatpush1.msra.mxu0 0.0
        %508 = vmatprep.subr.mxu0 0.0
        %509 = vmatpush1.msra.mxu0 0.0
        %510 = vmatprep.subr.mxu0 0.0
        %511 = vmatpush1.msra.mxu0 0.0
        %512 = vmatprep.subr.mxu0 0.0
        %513 = vmatpush1.msra.mxu0 0.0
        %514 = vmatprep.subr.mxu0 0.0
        %515 = vmatpush1.msra.mxu0 0.0
        %516 = vmatprep.subr.mxu0 0.0
        %517 = vmatpush1.msra.mxu0 0.0
        %518 = vmatprep.subr.mxu0 0.0
        %519 = vmatpush1.msra.mxu0 0.0
        %520 = vmatprep.subr.mxu0 0.0
        %521 = vmatpush1.msra.mxu0 0.0
        %522 = vmatprep.subr.mxu0 0.0
        %523 = vmatpush1.msra.mxu0 0.0
        %524 = vmatprep.subr.mxu0 0.0
        %525 = vmatpush1.msra.mxu0 0.0
        %526 = vmatprep.subr.mxu0 0.0
        %527 = vmatpush1.msra.mxu0 0.0
        %528 = vmatprep.subr.mxu0 0.0
        %529 = vmatpush1.msra.mxu0 0.0
        %530 = vmatprep.subr.mxu0 0.0
        %531 = vmatpush1.msra.mxu0 0.0
        %532 = vmatprep.subr.mxu0 0.0
        %533 = vmatpush1.msra.mxu0 0.0
        %534 = vmatprep.subr.mxu0 0.0
        %535 = vmatpush1.msra.mxu0 0.0
        %536 = vmatprep.subr.mxu0 0.0
        %537 = vmatpush1.msra.mxu0 0.0
        %538 = vmatprep.subr.mxu0 0.0
        %539 = vmatpush1.msra.mxu0 0.0
        %540 = vmatprep.subr.mxu0 0.0
        %541 = vmatpush1.msra.mxu0 0.0
        %542 = vmatprep.subr.mxu0 0.0
        %543 = vmatpush1.msra.mxu0 0.0
        %544 = vmatprep.subr.mxu0 0.0
        %545 = vmatpush1.msra.mxu0 0.0
        %546 = vmatprep.subr.mxu0 0.0
        %547 = vmatpush1.msra.mxu0 0.0
        %548 = vmatprep.subr.mxu0 0.0
        %549 = vmatpush1.msra.mxu0 0.0
        %550 = vmatprep.subr.mxu0 0.0
        %551 = vmatpush1.msra.mxu0 0.0
        %552 = vmatprep.mubr.f32.mxu0 0.0
        %553 = vmatmul.mubr.f32.gmra.mrb[0].mxu0 %v486
        %v554 = vpop.f32.mrb[0].mxu0
        %v555 = vadd.f32 0.0, %v554
        %v556 = vpop.f32.mrb[0].mxu0
        %557 = vdwg.mxu0
        %v558 = vld [vmem:[#allocation10] sm:$0xff]
        %v559 = vld [vmem:[#allocation10 + $0x8] sm:$0xff]
        %v560 = vld [vmem:[#allocation10 + $0x10] sm:$0xff]
        %v561 = vld [vmem:[#allocation10 + $0x18] sm:$0xff]
        %v562 = vld [vmem:[%s5] sm:$0x1]
        %v564 = vlaneseq
        %v565 = vshrl.u32 %v564, 7
        %v566 = vsub.s32 0, %v565
        %v567 = vrot.slane %v562, %v566
        %569 = vmatprep.subr.mxu0 0.0
        %570 = vmatpush1.msra.mxu0 %v558
        %571 = vmatprep.subr.mxu0 0.0
        %572 = vmatpush1.msra.mxu0 %v559
        %573 = vmatprep.subr.mxu0 0.0
        %574 = vmatpush1.msra.mxu0 %v560
        %575 = vmatprep.subr.mxu0 0.0
        %576 = vmatpush1.msra.mxu0 %v561
        %577 = vmatprep.subr.mxu0 0.0
        %578 = vmatpush1.msra.mxu0 0.0
        %579 = vmatprep.subr.mxu0 0.0
        %580 = vmatpush1.msra.mxu0 0.0
        %581 = vmatprep.subr.mxu0 0.0
        %582 = vmatpush1.msra.mxu0 0.0
        %583 = vmatprep.subr.mxu0 0.0
        %584 = vmatpush1.msra.mxu0 0.0
        %585 = vmatprep.subr.mxu0 0.0
        %586 = vmatpush1.msra.mxu0 0.0
        %587 = vmatprep.subr.mxu0 0.0
        %588 = vmatpush1.msra.mxu0 0.0
        %589 = vmatprep.subr.mxu0 0.0
        %590 = vmatpush1.msra.mxu0 0.0
        %591 = vmatprep.subr.mxu0 0.0
        %592 = vmatpush1.msra.mxu0 0.0
        %593 = vmatprep.subr.mxu0 0.0
        %594 = vmatpush1.msra.mxu0 0.0
        %595 = vmatprep.subr.mxu0 0.0
        %596 = vmatpush1.msra.mxu0 0.0
        %597 = vmatprep.subr.mxu0 0.0
        %598 = vmatpush1.msra.mxu0 0.0
        %599 = vmatprep.subr.mxu0 0.0
        %600 = vmatpush1.msra.mxu0 0.0
        %601 = vmatprep.subr.mxu0 0.0
        %602 = vmatpush1.msra.mxu0 0.0
        %603 = vmatprep.subr.mxu0 0.0
        %604 = vmatpush1.msra.mxu0 0.0
        %605 = vmatprep.subr.mxu0 0.0
        %606 = vmatpush1.msra.mxu0 0.0
        %607 = vmatprep.subr.mxu0 0.0
        %608 = vmatpush1.msra.mxu0 0.0
        %609 = vmatprep.subr.mxu0 0.0
        %610 = vmatpush1.msra.mxu0 0.0
        %611 = vmatprep.subr.mxu0 0.0
        %612 = vmatpush1.msra.mxu0 0.0
        %613 = vmatprep.subr.mxu0 0.0
        %614 = vmatpush1.msra.mxu0 0.0
        %615 = vmatprep.subr.mxu0 0.0
        %616 = vmatpush1.msra.mxu0 0.0
        %617 = vmatprep.subr.mxu0 0.0
        %618 = vmatpush1.msra.mxu0 0.0
        %619 = vmatprep.subr.mxu0 0.0
        %620 = vmatpush1.msra.mxu0 0.0
        %621 = vmatprep.subr.mxu0 0.0
        %622 = vmatpush1.msra.mxu0 0.0
        %623 = vmatprep.subr.mxu0 0.0
        %624 = vmatpush1.msra.mxu0 0.0
        %625 = vmatprep.subr.mxu0 0.0
        %626 = vmatpush1.msra.mxu0 0.0
        %627 = vmatprep.subr.mxu0 0.0
        %628 = vmatpush1.msra.mxu0 0.0
        %629 = vmatprep.subr.mxu0 0.0
        %630 = vmatpush1.msra.mxu0 0.0
        %631 = vmatprep.subr.mxu0 0.0
        %632 = vmatpush1.msra.mxu0 0.0
        %633 = vmatprep.mubr.f32.mxu0 0.0
        %634 = vmatmul.mubr.f32.gmra.mrb[0].mxu0 %v486
        %v635 = vpop.f32.mrb[0].mxu0
        %v636 = vadd.f32 %v567, %v635
        %v637 = vpop.f32.mrb[0].mxu0
        %638 = vdwg.mxu0
        %v639 = vlaneseq
        %v640 = vshrl.u32 %v639, 7
        %v641 = vlaneseq
        %v642 = vand.u32 %v641, 127
        %vm643 = vcmp.le.s32.totalorder %v642, %v640
        %vm644 = vcmask 64512
        %v646 = vsel %vm644, %v478, 0
        %v649 = vsel %vm644, %v555, 0
        %651 = vmatprep.subr.mxu0 0.0
        %652 = vmatpush1.xpose.msra.mxu0 %v649
        %653 = vmatprep.subr.mxu0 0.0
        %654 = vmatpush1.xpose.msra.mxu0 0.0
        %655 = vmatprep.subr.mxu0 0.0
        %656 = vmatpush1.xpose.msra.mxu0 0.0
        %657 = vmatprep.subr.mxu0 0.0
        %658 = vmatpush1.xpose.msra.mxu0 0.0
        %659 = vmatprep.subr.mxu0 0.0
        %660 = vmatpush1.xpose.msra.mxu0 0.0
        %661 = vmatprep.subr.mxu0 0.0
        %662 = vmatpush1.xpose.msra.mxu0 0.0
        %663 = vmatprep.subr.mxu0 0.0
        %664 = vmatpush1.xpose.msra.mxu0 0.0
        %665 = vmatprep.subr.mxu0 0.0
        %666 = vmatpush1.xpose.msra.mxu0 0.0
        %667 = vmatprep.subr.mxu0 0.0
        %668 = vmatpush1.xpose.msra.mxu0 0.0
        %669 = vmatprep.subr.mxu0 0.0
        %670 = vmatpush1.xpose.msra.mxu0 0.0
        %671 = vmatprep.subr.mxu0 0.0
        %672 = vmatpush1.xpose.msra.mxu0 0.0
        %673 = vmatprep.subr.mxu0 0.0
        %674 = vmatpush1.xpose.msra.mxu0 0.0
        %675 = vmatprep.subr.mxu0 0.0
        %676 = vmatpush1.xpose.msra.mxu0 0.0
        %677 = vmatprep.subr.mxu0 0.0
        %678 = vmatpush1.xpose.msra.mxu0 0.0
        %679 = vmatprep.subr.mxu0 0.0
        %680 = vmatpush1.xpose.msra.mxu0 0.0
        %681 = vmatprep.subr.mxu0 0.0
        %682 = vmatpush1.xpose.msra.mxu0 0.0
        %683 = vmatprep.subr.mxu0 0.0
        %684 = vmatpush1.xpose.msra.mxu0 0.0
        %685 = vmatprep.subr.mxu0 0.0
        %686 = vmatpush1.xpose.msra.mxu0 0.0
        %687 = vmatprep.subr.mxu0 0.0
        %688 = vmatpush1.xpose.msra.mxu0 0.0
        %689 = vmatprep.subr.mxu0 0.0
        %690 = vmatpush1.xpose.msra.mxu0 0.0
        %691 = vmatprep.subr.mxu0 0.0
        %692 = vmatpush1.xpose.msra.mxu0 0.0
        %693 = vmatprep.subr.mxu0 0.0
        %694 = vmatpush1.xpose.msra.mxu0 0.0
        %695 = vmatprep.subr.mxu0 0.0
        %696 = vmatpush1.xpose.msra.mxu0 0.0
        %697 = vmatprep.subr.mxu0 0.0
        %698 = vmatpush1.xpose.msra.mxu0 0.0
        %699 = vmatprep.subr.mxu0 0.0
        %700 = vmatpush1.xpose.msra.mxu0 0.0
        %701 = vmatprep.subr.mxu0 0.0
        %702 = vmatpush1.xpose.msra.mxu0 0.0
        %703 = vmatprep.subr.mxu0 0.0
        %704 = vmatpush1.xpose.msra.mxu0 0.0
        %705 = vmatprep.subr.mxu0 0.0
        %706 = vmatpush1.xpose.msra.mxu0 0.0
        %707 = vmatprep.subr.mxu0 0.0
        %708 = vmatpush1.xpose.msra.mxu0 0.0
        %709 = vmatprep.subr.mxu0 0.0
        %710 = vmatpush1.xpose.msra.mxu0 0.0
        %711 = vmatprep.subr.mxu0 0.0
        %712 = vmatpush1.xpose.msra.mxu0 0.0
        %713 = vmatprep.subr.mxu0 0.0
        %714 = vmatpush1.xpose.msra.mxu0 0.0
        %715 = vmatprep.mubr.f32.mxu0 0.0
        %716 = vmatmul.mubr.f32.gmra.mrb[0].mxu0 %v646
        %v717 = vpop.f32.mrb[0].mxu0
        %v718 = vadd.f32 0.0, %v717
        %v719 = vpop.f32.mrb[0].mxu0
        %720 = vdwg.mxu0
        %v721 = vmul.f32 %v718, 0.35355338
        %v722 = vsel %vm643, %v721, -1e+30
        %v723 = vsel %vm644, %v722, -inf
        %724 = vmax.xlane.f32.xlu0 %v723
        %v725 = vpop.xlane.xlu0 %724
        %v726 = vsub.f32 %v722, %v725
        %v727 = vmul.f32 %v726, 1.442695
        %v728 = vpow.pop %v727
        %v729 = vsel %vm644, %v728, 0.0
        %730 = vadd.xlane.f32.xlu0 %v729
        %v731 = vpop.xlane.xlu0 %730
        %v732 = vrcp.pop %v731
        %v733 = vmul.f32 %v728, %v732
        %v735 = vsel %vm644, %v733, 0
        %737 = vmatprep.subr.mxu0 0.0
        %738 = vmatpush1.msra.mxu0 %v636
        %739 = vmatprep.subr.mxu0 0.0
        %740 = vmatpush1.msra.mxu0 0.0
        %741 = vmatprep.subr.mxu0 0.0
        %742 = vmatpush1.msra.mxu0 0.0
        %743 = vmatprep.subr.mxu0 0.0
        %744 = vmatpush1.msra.mxu0 0.0
        %745 = vmatprep.subr.mxu0 0.0
        %746 = vmatpush1.msra.mxu0 0.0
        %747 = vmatprep.subr.mxu0 0.0
        %748 = vmatpush1.msra.mxu0 0.0
        %749 = vmatprep.subr.mxu0 0.0
        %750 = vmatpush1.msra.mxu0 0.0
        %751 = vmatprep.subr.mxu0 0.0
        %752 = vmatpush1.msra.mxu0 0.0
        %753 = vmatprep.subr.mxu0 0.0
        %754 = vmatpush1.msra.mxu0 0.0
        %755 = vmatprep.subr.mxu0 0.0
        %756 = vmatpush1.msra.mxu0 0.0
        %757 = vmatprep.subr.mxu0 0.0
        %758 = vmatpush1.msra.mxu0 0.0
        %759 = vmatprep.subr.mxu0 0.0
        %760 = vmatpush1.msra.mxu0 0.0
        %761 = vmatprep.subr.mxu0 0.0
        %762 = vmatpush1.msra.mxu0 0.0
        %763 = vmatprep.subr.mxu0 0.0
        %764 = vmatpush1.msra.mxu0 0.0
        %765 = vmatprep.subr.mxu0 0.0
        %766 = vmatpush1.msra.mxu0 0.0
        %767 = vmatprep.subr.mxu0 0.0
        %768 = vmatpush1.msra.mxu0 0.0
        %769 = vmatprep.subr.mxu0 0.0
        %770 = vmatpush1.msra.mxu0 0.0
        %771 = vmatprep.subr.mxu0 0.0
        %772 = vmatpush1.msra.mxu0 0.0
        %773 = vmatprep.subr.mxu0 0.0
        %774 = vmatpush1.msra.mxu0 0.0
        %775 = vmatprep.subr.mxu0 0.0
        %776 = vmatpush1.msra.mxu0 0.0
        %777 = vmatprep.subr.mxu0 0.0
        %778 = vmatpush1.msra.mxu0 0.0
        %779 = vmatprep.subr.mxu0 0.0
        %780 = vmatpush1.msra.mxu0 0.0
        %781 = vmatprep.subr.mxu0 0.0
        %782 = vmatpush1.msra.mxu0 0.0
        %783 = vmatprep.subr.mxu0 0.0
        %784 = vmatpush1.msra.mxu0 0.0
        %785 = vmatprep.subr.mxu0 0.0
        %786 = vmatpush1.msra.mxu0 0.0
        %787 = vmatprep.subr.mxu0 0.0
        %788 = vmatpush1.msra.mxu0 0.0
        %789 = vmatprep.subr.mxu0 0.0
        %790 = vmatpush1.msra.mxu0 0.0
        %791 = vmatprep.subr.mxu0 0.0
        %792 = vmatpush1.msra.mxu0 0.0
        %793 = vmatprep.subr.mxu0 0.0
        %794 = vmatpush1.msra.mxu0 0.0
        %795 = vmatprep.subr.mxu0 0.0
        %796 = vmatpush1.msra.mxu0 0.0
        %797 = vmatprep.subr.mxu0 0.0
        %798 = vmatpush1.msra.mxu0 0.0
        %799 = vmatprep.subr.mxu0 0.0
        %800 = vmatpush1.msra.mxu0 0.0
        %801 = vmatprep.mubr.f32.mxu0 0.0
        %802 = vmatmul.mubr.f32.gmra.mrb[0].mxu0 %v735
        %v803 = vpop.f32.mrb[0].mxu0
        %v804 = vadd.f32 0.0, %v803
        %v805 = vpop.f32.mrb[0].mxu0
        %806 = vdwg.mxu0
        %807 = vrot.lane.b32.xlu0 %v478, 120
        %v808 = vpop.permute.xlu0 %807
        %809 = vrot.lane.b32.xlu0 %v555, 120
        %v810 = vpop.permute.xlu0 %809
        %v811 = vsel %vm644, %v808, 0
        %v813 = vsel %vm644, %v810, 0
        %815 = vmatprep.subr.mxu0 0.0
        %816 = vmatpush1.xpose.msra.mxu0 %v813
        %817 = vmatprep.subr.mxu0 0.0
        %818 = vmatpush1.xpose.msra.mxu0 0.0
        %819 = vmatprep.subr.mxu0 0.0
        %820 = vmatpush1.xpose.msra.mxu0 0.0
        %821 = vmatprep.subr.mxu0 0.0
        %822 = vmatpush1.xpose.msra.mxu0 0.0
        %823 = vmatprep.subr.mxu0 0.0
        %824 = vmatpush1.xpose.msra.mxu0 0.0
        %825 = vmatprep.subr.mxu0 0.0
        %826 = vmatpush1.xpose.msra.mxu0 0.0
        %827 = vmatprep.subr.mxu0 0.0
        %828 = vmatpush1.xpose.msra.mxu0 0.0
        %829 = vmatprep.subr.mxu0 0.0
        %830 = vmatpush1.xpose.msra.mxu0 0.0
        %831 = vmatprep.subr.mxu0 0.0
        %832 = vmatpush1.xpose.msra.mxu0 0.0
        %833 = vmatprep.subr.mxu0 0.0
        %834 = vmatpush1.xpose.msra.mxu0 0.0
        %835 = vmatprep.subr.mxu0 0.0
        %836 = vmatpush1.xpose.msra.mxu0 0.0
        %837 = vmatprep.subr.mxu0 0.0
        %838 = vmatpush1.xpose.msra.mxu0 0.0
        %839 = vmatprep.subr.mxu0 0.0
        %840 = vmatpush1.xpose.msra.mxu0 0.0
        %841 = vmatprep.subr.mxu0 0.0
        %842 = vmatpush1.xpose.msra.mxu0 0.0
        %843 = vmatprep.subr.mxu0 0.0
        %844 = vmatpush1.xpose.msra.mxu0 0.0
        %845 = vmatprep.subr.mxu0 0.0
        %846 = vmatpush1.xpose.msra.mxu0 0.0
        %847 = vmatprep.subr.mxu0 0.0
        %848 = vmatpush1.xpose.msra.mxu0 0.0
        %849 = vmatprep.subr.mxu0 0.0
        %850 = vmatpush1.xpose.msra.mxu0 0.0
        %851 = vmatprep.subr.mxu0 0.0
        %852 = vmatpush1.xpose.msra.mxu0 0.0
        %853 = vmatprep.subr.mxu0 0.0
        %854 = vmatpush1.xpose.msra.mxu0 0.0
        %855 = vmatprep.subr.mxu0 0.0
        %856 = vmatpush1.xpose.msra.mxu0 0.0
        %857 = vmatprep.subr.mxu0 0.0
        %858 = vmatpush1.xpose.msra.mxu0 0.0
        %859 = vmatprep.subr.mxu0 0.0
        %860 = vmatpush1.xpose.msra.mxu0 0.0
        %861 = vmatprep.subr.mxu0 0.0
        %862 = vmatpush1.xpose.msra.mxu0 0.0
        %863 = vmatprep.subr.mxu0 0.0
        %864 = vmatpush1.xpose.msra.mxu0 0.0
        %865 = vmatprep.subr.mxu0 0.0
        %866 = vmatpush1.xpose.msra.mxu0 0.0
        %867 = vmatprep.subr.mxu0 0.0
        %868 = vmatpush1.xpose.msra.mxu0 0.0
        %869 = vmatprep.subr.mxu0 0.0
        %870 = vmatpush1.xpose.msra.mxu0 0.0
        %871 = vmatprep.subr.mxu0 0.0
        %872 = vmatpush1.xpose.msra.mxu0 0.0
        %873 = vmatprep.subr.mxu0 0.0
        %874 = vmatpush1.xpose.msra.mxu0 0.0
        %875 = vmatprep.subr.mxu0 0.0
        %876 = vmatpush1.xpose.msra.mxu0 0.0
        %877 = vmatprep.subr.mxu0 0.0
        %878 = vmatpush1.xpose.msra.mxu0 0.0
        %879 = vmatprep.mubr.f32.mxu0 0.0
        %880 = vmatmul.mubr.f32.gmra.mrb[0].mxu0 %v811
        %v881 = vpop.f32.mrb[0].mxu0
        %v882 = vadd.f32 0.0, %v881
        %v883 = vpop.f32.mrb[0].mxu0
        %884 = vdwg.mxu0
        %v885 = vmul.f32 %v882, 0.35355338
        %v886 = vsel %vm643, %v885, -1e+30
        %v887 = vsel %vm644, %v886, -inf
        %888 = vmax.xlane.f32.xlu0 %v887
        %v889 = vpop.xlane.xlu0 %888
        %v890 = vsub.f32 %v886, %v889
        %v891 = vmul.f32 %v890, 1.442695
        %v892 = vpow.pop %v891
        %v893 = vsel %vm644, %v892, 0.0
        %894 = vadd.xlane.f32.xlu0 %v893
        %v895 = vpop.xlane.xlu0 %894
        %v896 = vrcp.pop %v895
        %v897 = vmul.f32 %v892, %v896
        %899 = vrot.lane.b32.xlu0 %v636, 120
        %v900 = vpop.permute.xlu0 %899
        %v903 = vsel %vm644, %v897, 0
        %905 = vmatprep.subr.mxu0 0.0
        %906 = vmatpush1.msra.mxu0 %v900
        %907 = vmatprep.subr.mxu0 0.0
        %908 = vmatpush1.msra.mxu0 0.0
        %909 = vmatprep.subr.mxu0 0.0
        %910 = vmatpush1.msra.mxu0 0.0
        %911 = vmatprep.subr.mxu0 0.0
        %912 = vmatpush1.msra.mxu0 0.0
        %913 = vmatprep.subr.mxu0 0.0
        %914 = vmatpush1.msra.mxu0 0.0
        %915 = vmatprep.subr.mxu0 0.0
        %916 = vmatpush1.msra.mxu0 0.0
        %917 = vmatprep.subr.mxu0 0.0
        %918 = vmatpush1.msra.mxu0 0.0
        %919 = vmatprep.subr.mxu0 0.0
        %920 = vmatpush1.msra.mxu0 0.0
        %921 = vmatprep.subr.mxu0 0.0
        %922 = vmatpush1.msra.mxu0 0.0
        %923 = vmatprep.subr.mxu0 0.0
        %924 = vmatpush1.msra.mxu0 0.0
        %925 = vmatprep.subr.mxu0 0.0
        %926 = vmatpush1.msra.mxu0 0.0
        %927 = vmatprep.subr.mxu0 0.0
        %928 = vmatpush1.msra.mxu0 0.0
        %929 = vmatprep.subr.mxu0 0.0
        %930 = vmatpush1.msra.mxu0 0.0
        %931 = vmatprep.subr.mxu0 0.0
        %932 = vmatpush1.msra.mxu0 0.0
        %933 = vmatprep.subr.mxu0 0.0
        %934 = vmatpush1.msra.mxu0 0.0
        %935 = vmatprep.subr.mxu0 0.0
        %936 = vmatpush1.msra.mxu0 0.0
        %937 = vmatprep.subr.mxu0 0.0
        %938 = vmatpush1.msra.mxu0 0.0
        %939 = vmatprep.subr.mxu0 0.0
        %940 = vmatpush1.msra.mxu0 0.0
        %941 = vmatprep.subr.mxu0 0.0
        %942 = vmatpush1.msra.mxu0 0.0
        %943 = vmatprep.subr.mxu0 0.0
        %944 = vmatpush1.msra.mxu0 0.0
        %945 = vmatprep.subr.mxu0 0.0
        %946 = vmatpush1.msra.mxu0 0.0
        %947 = vmatprep.subr.mxu0 0.0
        %948 = vmatpush1.msra.mxu0 0.0
        %949 = vmatprep.subr.mxu0 0.0
        %950 = vmatpush1.msra.mxu0 0.0
        %951 = vmatprep.subr.mxu0 0.0
        %952 = vmatpush1.msra.mxu0 0.0
        %953 = vmatprep.subr.mxu0 0.0
        %954 = vmatpush1.msra.mxu0 0.0
        %955 = vmatprep.subr.mxu0 0.0
        %956 = vmatpush1.msra.mxu0 0.0
        %957 = vmatprep.subr.mxu0 0.0
        %958 = vmatpush1.msra.mxu0 0.0
        %959 = vmatprep.subr.mxu0 0.0
        %960 = vmatpush1.msra.mxu0 0.0
        %961 = vmatprep.subr.mxu0 0.0
        %962 = vmatpush1.msra.mxu0 0.0
        %963 = vmatprep.subr.mxu0 0.0
        %964 = vmatpush1.msra.mxu0 0.0
        %965 = vmatprep.subr.mxu0 0.0
        %966 = vmatpush1.msra.mxu0 0.0
        %967 = vmatprep.subr.mxu0 0.0
        %968 = vmatpush1.msra.mxu0 0.0
        %969 = vmatprep.mubr.f32.mxu0 0.0
        %970 = vmatmul.mubr.f32.gmra.mrb[0].mxu0 %v903
        %v971 = vpop.f32.mrb[0].mxu0
        %v972 = vadd.f32 0.0, %v971
        %v973 = vpop.f32.mrb[0].mxu0
        %974 = vdwg.mxu0
        %975 = vrot.lane.b32.xlu0 %v478, 112
        %v976 = vpop.permute.xlu0 %975
        %977 = vrot.lane.b32.xlu0 %v555, 112
        %v978 = vpop.permute.xlu0 %977
        %v979 = vsel %vm644, %v976, 0
        %v981 = vsel %vm644, %v978, 0
        %983 = vmatprep.subr.mxu0 0.0
        %984 = vmatpush1.xpose.msra.mxu0 %v981
        %985 = vmatprep.subr.mxu0 0.0
        %986 = vmatpush1.xpose.msra.mxu0 0.0
        %987 = vmatprep.subr.mxu0 0.0
        %988 = vmatpush1.xpose.msra.mxu0 0.0
        %989 = vmatprep.subr.mxu0 0.0
        %990 = vmatpush1.xpose.msra.mxu0 0.0
        %991 = vmatprep.subr.mxu0 0.0
        %992 = vmatpush1.xpose.msra.mxu0 0.0
        %993 = vmatprep.subr.mxu0 0.0
        %994 = vmatpush1.xpose.msra.mxu0 0.0
        %995 = vmatprep.subr.mxu0 0.0
        %996 = vmatpush1.xpose.msra.mxu0 0.0
        %997 = vmatprep.subr.mxu0 0.0
        %998 = vmatpush1.xpose.msra.mxu0 0.0
        %999 = vmatprep.subr.mxu0 0.0
        %1000 = vmatpush1.xpose.msra.mxu0 0.0
        %1001 = vmatprep.subr.mxu0 0.0
        %1002 = vmatpush1.xpose.msra.mxu0 0.0
        %1003 = vmatprep.subr.mxu0 0.0
        %1004 = vmatpush1.xpose.msra.mxu0 0.0
        %1005 = vmatprep.subr.mxu0 0.0
        %1006 = vmatpush1.xpose.msra.mxu0 0.0
        %1007 = vmatprep.subr.mxu0 0.0
        %1008 = vmatpush1.xpose.msra.mxu0 0.0
        %1009 = vmatprep.subr.mxu0 0.0
        %1010 = vmatpush1.xpose.msra.mxu0 0.0
        %1011 = vmatprep.subr.mxu0 0.0
        %1012 = vmatpush1.xpose.msra.mxu0 0.0
        %1013 = vmatprep.subr.mxu0 0.0
        %1014 = vmatpush1.xpose.msra.mxu0 0.0
        %1015 = vmatprep.subr.mxu0 0.0
        %1016 = vmatpush1.xpose.msra.mxu0 0.0
        %1017 = vmatprep.subr.mxu0 0.0
        %1018 = vmatpush1.xpose.msra.mxu0 0.0
        %1019 = vmatprep.subr.mxu0 0.0
        %1020 = vmatpush1.xpose.msra.mxu0 0.0
        %1021 = vmatprep.subr.mxu0 0.0
        %1022 = vmatpush1.xpose.msra.mxu0 0.0
        %1023 = vmatprep.subr.mxu0 0.0
        %1024 = vmatpush1.xpose.msra.mxu0 0.0
        %1025 = vmatprep.subr.mxu0 0.0
        %1026 = vmatpush1.xpose.msra.mxu0 0.0
        %1027 = vmatprep.subr.mxu0 0.0
        %1028 = vmatpush1.xpose.msra.mxu0 0.0
        %1029 = vmatprep.subr.mxu0 0.0
        %1030 = vmatpush1.xpose.msra.mxu0 0.0
        %1031 = vmatprep.subr.mxu0 0.0
        %1032 = vmatpush1.xpose.msra.mxu0 0.0
        %1033 = vmatprep.subr.mxu0 0.0
        %1034 = vmatpush1.xpose.msra.mxu0 0.0
        %1035 = vmatprep.subr.mxu0 0.0
        %1036 = vmatpush1.xpose.msra.mxu0 0.0
        %1037 = vmatprep.subr.mxu0 0.0
        %1038 = vmatpush1.xpose.msra.mxu0 0.0
        %1039 = vmatprep.subr.mxu0 0.0
        %1040 = vmatpush1.xpose.msra.mxu0 0.0
        %1041 = vmatprep.subr.mxu0 0.0
        %1042 = vmatpush1.xpose.msra.mxu0 0.0
        %1043 = vmatprep.subr.mxu0 0.0
        %1044 = vmatpush1.xpose.msra.mxu0 0.0
        %1045 = vmatprep.subr.mxu0 0.0
        %1046 = vmatpush1.xpose.msra.mxu0 0.0
        %1047 = vmatprep.mubr.f32.mxu0 0.0
        %1048 = vmatmul.mubr.f32.gmra.mrb[0].mxu0 %v979
        %v1049 = vpop.f32.mrb[0].mxu0
        %v1050 = vadd.f32 0.0, %v1049
        %v1051 = vpop.f32.mrb[0].mxu0
        %1052 = vdwg.mxu0
        %v1053 = vmul.f32 %v1050, 0.35355338
        %v1054 = vsel %vm643, %v1053, -1e+30
        %v1055 = vsel %vm644, %v1054, -inf
        %1056 = vmax.xlane.f32.xlu0 %v1055
        %v1057 = vpop.xlane.xlu0 %1056
        %v1058 = vsub.f32 %v1054, %v1057
        %v1059 = vmul.f32 %v1058, 1.442695
        %v1060 = vpow.pop %v1059
        %v1061 = vsel %vm644, %v1060, 0.0
        %1062 = vadd.xlane.f32.xlu0 %v1061
        %v1063 = vpop.xlane.xlu0 %1062
        %v1064 = vrcp.pop %v1063
        %v1065 = vmul.f32 %v1060, %v1064
        %1066 = vrot.lane.b32.xlu0 %v636, 112
        %v1067 = vpop.permute.xlu0 %1066
        %v1070 = vsel %vm644, %v1065, 0
        %1072 = vmatprep.subr.mxu0 0.0
        %1073 = vmatpush1.msra.mxu0 %v1067
        %1074 = vmatprep.subr.mxu0 0.0
        %1075 = vmatpush1.msra.mxu0 0.0
        %1076 = vmatprep.subr.mxu0 0.0
        %1077 = vmatpush1.msra.mxu0 0.0
        %1078 = vmatprep.subr.mxu0 0.0
        %1079 = vmatpush1.msra.mxu0 0.0
        %1080 = vmatprep.subr.mxu0 0.0
        %1081 = vmatpush1.msra.mxu0 0.0
        %1082 = vmatprep.subr.mxu0 0.0
        %1083 = vmatpush1.msra.mxu0 0.0
        %1084 = vmatprep.subr.mxu0 0.0
        %1085 = vmatpush1.msra.mxu0 0.0
        %1086 = vmatprep.subr.mxu0 0.0
        %1087 = vmatpush1.msra.mxu0 0.0
        %1088 = vmatprep.subr.mxu0 0.0
        %1089 = vmatpush1.msra.mxu0 0.0
        %1090 = vmatprep.subr.mxu0 0.0
        %1091 = vmatpush1.msra.mxu0 0.0
        %1092 = vmatprep.subr.mxu0 0.0
        %1093 = vmatpush1.msra.mxu0 0.0
        %1094 = vmatprep.subr.mxu0 0.0
        %1095 = vmatpush1.msra.mxu0 0.0
        %1096 = vmatprep.subr.mxu0 0.0
        %1097 = vmatpush1.msra.mxu0 0.0
        %1098 = vmatprep.subr.mxu0 0.0
        %1099 = vmatpush1.msra.mxu0 0.0
        %1100 = vmatprep.subr.mxu0 0.0
        %1101 = vmatpush1.msra.mxu0 0.0
        %1102 = vmatprep.subr.mxu0 0.0
        %1103 = vmatpush1.msra.mxu0 0.0
        %1104 = vmatprep.subr.mxu0 0.0
        %1105 = vmatpush1.msra.mxu0 0.0
        %1106 = vmatprep.subr.mxu0 0.0
        %1107 = vmatpush1.msra.mxu0 0.0
        %1108 = vmatprep.subr.mxu0 0.0
        %1109 = vmatpush1.msra.mxu0 0.0
        %1110 = vmatprep.subr.mxu0 0.0
        %1111 = vmatpush1.msra.mxu0 0.0
        %1112 = vmatprep.subr.mxu0 0.0
        %1113 = vmatpush1.msra.mxu0 0.0
        %1114 = vmatprep.subr.mxu0 0.0
        %1115 = vmatpush1.msra.mxu0 0.0
        %1116 = vmatprep.subr.mxu0 0.0
        %1117 = vmatpush1.msra.mxu0 0.0
        %1118 = vmatprep.subr.mxu0 0.0
        %1119 = vmatpush1.msra.mxu0 0.0
        %1120 = vmatprep.subr.mxu0 0.0
        %1121 = vmatpush1.msra.mxu0 0.0
        %1122 = vmatprep.subr.mxu0 0.0
        %1123 = vmatpush1.msra.mxu0 0.0
        %1124 = vmatprep.subr.mxu0 0.0
        %1125 = vmatpush1.msra.mxu0 0.0
        %1126 = vmatprep.subr.mxu0 0.0
        %1127 = vmatpush1.msra.mxu0 0.0
        %1128 = vmatprep.subr.mxu0 0.0
        %1129 = vmatpush1.msra.mxu0 0.0
        %1130 = vmatprep.subr.mxu0 0.0
        %1131 = vmatpush1.msra.mxu0 0.0
        %1132 = vmatprep.subr.mxu0 0.0
        %1133 = vmatpush1.msra.mxu0 0.0
        %1134 = vmatprep.subr.mxu0 0.0
        %1135 = vmatpush1.msra.mxu0 0.0
        %1136 = vmatprep.mubr.f32.mxu0 0.0
        %1137 = vmatmul.mubr.f32.gmra.mrb[0].mxu0 %v1070
        %v1138 = vpop.f32.mrb[0].mxu0
        %v1139 = vadd.f32 0.0, %v1138
        %v1140 = vpop.f32.mrb[0].mxu0
        %1141 = vdwg.mxu0
        %1142 = vrot.lane.b32.xlu0 %v478, 104
        %v1143 = vpop.permute.xlu0 %1142
        %1144 = vrot.lane.b32.xlu0 %v555, 104
        %v1145 = vpop.permute.xlu0 %1144
        %v1146 = vsel %vm644, %v1143, 0
        %v1148 = vsel %vm644, %v1145, 0
        %1150 = vmatprep.subr.mxu0 0.0
        %1151 = vmatpush1.xpose.msra.mxu0 %v1148
        %1152 = vmatprep.subr.mxu0 0.0
        %1153 = vmatpush1.xpose.msra.mxu0 0.0
        %1154 = vmatprep.subr.mxu0 0.0
        %1155 = vmatpush1.xpose.msra.mxu0 0.0
        %1156 = vmatprep.subr.mxu0 0.0
        %1157 = vmatpush1.xpose.msra.mxu0 0.0
        %1158 = vmatprep.subr.mxu0 0.0
        %1159 = vmatpush1.xpose.msra.mxu0 0.0
        %1160 = vmatprep.subr.mxu0 0.0
        %1161 = vmatpush1.xpose.msra.mxu0 0.0
        %1162 = vmatprep.subr.mxu0 0.0
        %1163 = vmatpush1.xpose.msra.mxu0 0.0
        %1164 = vmatprep.subr.mxu0 0.0
        %1165 = vmatpush1.xpose.msra.mxu0 0.0
        %1166 = vmatprep.subr.mxu0 0.0
        %1167 = vmatpush1.xpose.msra.mxu0 0.0
        %1168 = vmatprep.subr.mxu0 0.0
        %1169 = vmatpush1.xpose.msra.mxu0 0.0
        %1170 = vmatprep.subr.mxu0 0.0
        %1171 = vmatpush1.xpose.msra.mxu0 0.0
        %1172 = vmatprep.subr.mxu0 0.0
        %1173 = vmatpush1.xpose.msra.mxu0 0.0
        %1174 = vmatprep.subr.mxu0 0.0
        %1175 = vmatpush1.xpose.msra.mxu0 0.0
        %1176 = vmatprep.subr.mxu0 0.0
        %1177 = vmatpush1.xpose.msra.mxu0 0.0
        %1178 = vmatprep.subr.mxu0 0.0
        %1179 = vmatpush1.xpose.msra.mxu0 0.0
        %1180 = vmatprep.subr.mxu0 0.0
        %1181 = vmatpush1.xpose.msra.mxu0 0.0
        %1182 = vmatprep.subr.mxu0 0.0
        %1183 = vmatpush1.xpose.msra.mxu0 0.0
        %1184 = vmatprep.subr.mxu0 0.0
        %1185 = vmatpush1.xpose.msra.mxu0 0.0
        %1186 = vmatprep.subr.mxu0 0.0
        %1187 = vmatpush1.xpose.msra.mxu0 0.0
        %1188 = vmatprep.subr.mxu0 0.0
        %1189 = vmatpush1.xpose.msra.mxu0 0.0
        %1190 = vmatprep.subr.mxu0 0.0
        %1191 = vmatpush1.xpose.msra.mxu0 0.0
        %1192 = vmatprep.subr.mxu0 0.0
        %1193 = vmatpush1.xpose.msra.mxu0 0.0
        %1194 = vmatprep.subr.mxu0 0.0
        %1195 = vmatpush1.xpose.msra.mxu0 0.0
        %1196 = vmatprep.subr.mxu0 0.0
        %1197 = vmatpush1.xpose.msra.mxu0 0.0
        %1198 = vmatprep.subr.mxu0 0.0
        %1199 = vmatpush1.xpose.msra.mxu0 0.0
        %1200 = vmatprep.subr.mxu0 0.0
        %1201 = vmatpush1.xpose.msra.mxu0 0.0
        %1202 = vmatprep.subr.mxu0 0.0
        %1203 = vmatpush1.xpose.msra.mxu0 0.0
        %1204 = vmatprep.subr.mxu0 0.0
        %1205 = vmatpush1.xpose.msra.mxu0 0.0
        %1206 = vmatprep.subr.mxu0 0.0
        %1207 = vmatpush1.xpose.msra.mxu0 0.0
        %1208 = vmatprep.subr.mxu0 0.0
        %1209 = vmatpush1.xpose.msra.mxu0 0.0
        %1210 = vmatprep.subr.mxu0 0.0
        %1211 = vmatpush1.xpose.msra.mxu0 0.0
        %1212 = vmatprep.subr.mxu0 0.0
        %1213 = vmatpush1.xpose.msra.mxu0 0.0
        %1214 = vmatprep.mubr.f32.mxu0 0.0
        %1215 = vmatmul.mubr.f32.gmra.mrb[0].mxu0 %v1146
        %v1216 = vpop.f32.mrb[0].mxu0
        %v1217 = vadd.f32 0.0, %v1216
        %v1218 = vpop.f32.mrb[0].mxu0
        %1219 = vdwg.mxu0
        %v1220 = vmul.f32 %v1217, 0.35355338
        %v1221 = vsel %vm643, %v1220, -1e+30
        %v1222 = vsel %vm644, %v1221, -inf
        %1223 = vmax.xlane.f32.xlu0 %v1222
        %v1224 = vpop.xlane.xlu0 %1223
        %v1225 = vsub.f32 %v1221, %v1224
        %v1226 = vmul.f32 %v1225, 1.442695
        %v1227 = vpow.pop %v1226
        %v1228 = vsel %vm644, %v1227, 0.0
        %1229 = vadd.xlane.f32.xlu0 %v1228
        %v1230 = vpop.xlane.xlu0 %1229
        %v1231 = vrcp.pop %v1230
        %v1232 = vmul.f32 %v1227, %v1231
        %1233 = vrot.lane.b32.xlu0 %v636, 104
        %v1234 = vpop.permute.xlu0 %1233
        %v1237 = vsel %vm644, %v1232, 0
        %1239 = vmatprep.subr.mxu0 0.0
        %1240 = vmatpush1.msra.mxu0 %v1234
        %1241 = vmatprep.subr.mxu0 0.0
        %1242 = vmatpush1.msra.mxu0 0.0
        %1243 = vmatprep.subr.mxu0 0.0
        %1244 = vmatpush1.msra.mxu0 0.0
        %1245 = vmatprep.subr.mxu0 0.0
        %1246 = vmatpush1.msra.mxu0 0.0
        %1247 = vmatprep.subr.mxu0 0.0
        %1248 = vmatpush1.msra.mxu0 0.0
        %1249 = vmatprep.subr.mxu0 0.0
        %1250 = vmatpush1.msra.mxu0 0.0
        %1251 = vmatprep.subr.mxu0 0.0
        %1252 = vmatpush1.msra.mxu0 0.0
        %1253 = vmatprep.subr.mxu0 0.0
        %1254 = vmatpush1.msra.mxu0 0.0
        %1255 = vmatprep.subr.mxu0 0.0
        %1256 = vmatpush1.msra.mxu0 0.0
        %1257 = vmatprep.subr.mxu0 0.0
        %1258 = vmatpush1.msra.mxu0 0.0
        %1259 = vmatprep.subr.mxu0 0.0
        %1260 = vmatpush1.msra.mxu0 0.0
        %1261 = vmatprep.subr.mxu0 0.0
        %1262 = vmatpush1.msra.mxu0 0.0
        %1263 = vmatprep.subr.mxu0 0.0
        %1264 = vmatpush1.msra.mxu0 0.0
        %1265 = vmatprep.subr.mxu0 0.0
        %1266 = vmatpush1.msra.mxu0 0.0
        %1267 = vmatprep.subr.mxu0 0.0
        %1268 = vmatpush1.msra.mxu0 0.0
        %1269 = vmatprep.subr.mxu0 0.0
        %1270 = vmatpush1.msra.mxu0 0.0
        %1271 = vmatprep.subr.mxu0 0.0
        %1272 = vmatpush1.msra.mxu0 0.0
        %1273 = vmatprep.subr.mxu0 0.0
        %1274 = vmatpush1.msra.mxu0 0.0
        %1275 = vmatprep.subr.mxu0 0.0
        %1276 = vmatpush1.msra.mxu0 0.0
        %1277 = vmatprep.subr.mxu0 0.0
        %1278 = vmatpush1.msra.mxu0 0.0
        %1279 = vmatprep.subr.mxu0 0.0
        %1280 = vmatpush1.msra.mxu0 0.0
        %1281 = vmatprep.subr.mxu0 0.0
        %1282 = vmatpush1.msra.mxu0 0.0
        %1283 = vmatprep.subr.mxu0 0.0
        %1284 = vmatpush1.msra.mxu0 0.0
        %1285 = vmatprep.subr.mxu0 0.0
        %1286 = vmatpush1.msra.mxu0 0.0
        %1287 = vmatprep.subr.mxu0 0.0
        %1288 = vmatpush1.msra.mxu0 0.0
        %1289 = vmatprep.subr.mxu0 0.0
        %1290 = vmatpush1.msra.mxu0 0.0
        %1291 = vmatprep.subr.mxu0 0.0
        %1292 = vmatpush1.msra.mxu0 0.0
        %1293 = vmatprep.subr.mxu0 0.0
        %1294 = vmatpush1.msra.mxu0 0.0
        %1295 = vmatprep.subr.mxu0 0.0
        %1296 = vmatpush1.msra.mxu0 0.0
        %1297 = vmatprep.subr.mxu0 0.0
        %1298 = vmatpush1.msra.mxu0 0.0
        %1299 = vmatprep.subr.mxu0 0.0
        %1300 = vmatpush1.msra.mxu0 0.0
        %1301 = vmatprep.subr.mxu0 0.0
        %1302 = vmatpush1.msra.mxu0 0.0
        %1303 = vmatprep.mubr.f32.mxu0 0.0
        %1304 = vmatmul.mubr.f32.gmra.mrb[0].mxu0 %v1237
        %v1305 = vpop.f32.mrb[0].mxu0
        %v1306 = vadd.f32 0.0, %v1305
        %v1307 = vpop.f32.mrb[0].mxu0
        %1308 = vdwg.mxu0
        %1310 = vrot.lane.b32.xlu0 %v972, 8
        %v1311 = vpop.permute.xlu0 %1310
        %1314 = vrot.lane.b32.xlu0 %v1139, 16
        %v1315 = vpop.permute.xlu0 %1314
        %1318 = vrot.lane.b32.xlu0 %v1306, 24
        %v1319 = vpop.permute.xlu0 %1318
        %v1321 = vsel %vm644, %v804, %v1311
        %vm1322 = vcmask 130048
        %v1323 = vsel %vm1322, %v1321, %v1315
        %vm1324 = vcmask 195584
        %v1325 = vsel %vm1324, %v1323, %v1319
        %v1326 = vadd.f32 %v1325, %v401
        %v1327 = vsel %vm407, %v1326, 0.0
        %1328 = vadd.xlane.f32.xlu0 %v1327
        %v1329 = vpop.xlane.xlu0 %1328
        %v1330 = vrcp.pop 32.0
        %v1331 = vmul.f32 %v1329, %v1330
        %v1332 = vsub.f32 %v1326, %v1331
        %v1333 = vmul.f32 %v1332, %v1332
        %v1334 = vsel %vm407, %v1333, 0.0
        %1335 = vadd.xlane.f32.xlu0 %v1334
        %v1336 = vpop.xlane.xlu0 %1335
        %v1337 = vmul.f32 %v1336, %v1330
        %v1338 = vadd.f32 %v1337, 1e-05
        %v1339 = vrsqrt.pop %v1338
        %v1340 = vmul.f32 %v1332, %v1339
        %v1341 = vld [vmem:[%s6] sm:$0x1]
        %v1343 = vlaneseq
        %v1344 = vshrl.u32 %v1343, 7
        %v1345 = vsub.s32 0, %v1344
        %v1346 = vrot.slane %v1341, %v1345
        %v1348 = vmul.f32 %v1340, %v1346
        %v1349 = vld [vmem:[%s7] sm:$0x1]
        %v1351 = vlaneseq
        %v1352 = vshrl.u32 %v1351, 7
        %v1353 = vsub.s32 0, %v1352
        %v1354 = vrot.slane %v1349, %v1353
        %v1356 = vadd.f32 %v1348, %v1354
        %1357 = vst.msk [vmem:[%s400] sm:$0xff] %vm407, %v1356
        %s1358 = sand.u32 %s215, 1
        %s1359 = scalar_lea.sflag [#allocation4], %s1358
        %s1360 = sand.u32 %s215, 1
        %s1361 = smul.addr %s1360, 8
        %s1362 = scalar_lea.vmem [#allocation11], %s1361
        // Predicated region
        $region73: #{tpu_custom_call.1} parent=51 // pred_check
          %p1363 = pneg %p225
        $region74: #{tpu_custom_call.1} parent=51 // pred_check_branch
          %1365 = sbr.rel (%p1363) target = $region76
        $region75: #{tpu_custom_call.1} parent=51 // pred_region
          %s1367 = ssub.s32 128, 128
          %1368 = vsyncadd %s1359, %s1367
          %s1369 = smul.addr %s29, 128
          %s1370 = scalar_lea.hbm %s8, %s1369
          %s1372 = sshll.u32 %s1362, 4
          %s1373 = int_to_ptr.vmem [resolvable:$true] %s1372
          %1375 = dma.vmem_to_hbm [thread:$0]  %s1373, 128, %s1370, %s1359
        $region76: #{tpu_custom_call.1} parent=51 // pred_fallthru
          _
      $region52: #{tpu_custom_call.1} parent=5 // pred_fallthru
        _
      %p1376 = scmp.le.s32.totalorder 2, %s24
      // Predicated region
      $region77: #{tpu_custom_call.1} parent=5 // pred_check
        %p1377 = pneg %p1376
      $region78: #{tpu_custom_call.1} parent=5 // pred_check_branch
        %1379 = sbr.rel (%p1377) target = $region80
      $region79: #{tpu_custom_call.1} parent=5 // pred_region
        %s1380 = ssub.s32 %s24, 2
        // Predicated region
        $region81: #{tpu_custom_call.1} parent=79 // pred_check
          %p1381 = pneg %p231
        $region82: #{tpu_custom_call.1} parent=79 // pred_check_branch
          %1383 = sbr.rel (%p1381) target = $region84
        $region83: #{tpu_custom_call.1} parent=79 // pred_region
          %s1384 = sand.u32 %s216, 1
          %s1385 = scalar_lea.sflag [#allocation4], %s1384
          %s1386 = sand.u32 %s216, 1
          %s1387 = smul.addr %s1386, 8
          %s1388 = scalar_lea.vmem [#allocation11], %s1387
          %1389 = dma.done %s1385, 128
        $region84: #{tpu_custom_call.1} parent=79 // pred_fallthru
          _
      $region80: #{tpu_custom_call.1} parent=5 // pred_fallthru
        _
    $region6: #{tpu_custom_call.1} parent=1 // loop_footer
      %s28 = sadd.s32 1, %s24
    $region7: #{tpu_custom_call.1} parent=1 // loop_footer_branch
      %23 = sbr.rel target = $region3
    $region8: #{tpu_custom_call.1} parent=1 // loop_exit
      _
    %1390 = vsyncpa [#allocation3], 1
    %s1391 = scalar_lea.sflag [#allocation3], 1
    %1392 = vsyncpa %s1391, 1
    %1393 = vsyncpa [#allocation6], 1
    %s1394 = scalar_lea.sflag [#allocation6], 1
    %1395 = vsyncpa %s1394, 1
    %1396 = vsyncpa [#allocation9], 1
    %1397 = vsyncpa [#allocation4], 1
    %s1398 = scalar_lea.sflag [#allocation4], 1
    %1399 = vsyncpa %s1398, 1

</llo_original>
